<compile_context>
chip_gen: v7x
topology: tpu7x:2x2x1
jax: 0.10.0
libtpu: 0.0.40
codegen_flags: <defaults>
</compile_context>

<pallas_src>
import functools
import math

import jax
import jax.numpy as jnp
from jax.experimental import pallas as pl
from jax.experimental.pallas import tpu as pltpu


def mha_kernel(x_ref, wqkv_ref, wo_ref, bo_ref, o_ref, *, num_heads):
    """One grid step processes one batch row.

    x_ref    : (1, S, E)   VMEM, native dtype
    wqkv_ref : (E, 3E)     VMEM  fused [Wq^T*scale | Wk^T | Wv^T]
    wo_ref   : (H, D, E)   VMEM  per-head rows of o_proj.weight.T
    bo_ref   : (1, E)      VMEM  o_proj.bias
    o_ref    : (1, S, E)   VMEM
    """
    _, S, E = x_ref.shape
    H = num_heads
    D = E // H

    x = x_ref[0]                               # (S, E) native dtype
    wqkv = wqkv_ref[...]                       # (E, 3E) native dtype
    bo = bo_ref[...].astype(jnp.float32)       # (1, E)

    # Fused QKV projection: single MXU matmul, N = 3E; f32 accumulation,
    # operands stay in the input dtype.
    qkv = jnp.dot(x, wqkv, preferred_element_type=jnp.float32)     # (S, 3E) f32
    qkv = qkv.astype(x.dtype)                  # MXU-native dtype for QK^T / PV

    # Per-head attention; each head's output-projection contribution is
    # accumulated straight into one (S, E) f32 accumulator, so per-head
    # temporaries die every iteration (bounded live ranges).
    acc = jnp.zeros((S, E), jnp.float32)
    for h in range(H):                         # static; H is small
        q_h = qkv[:, 0 * E + h * D: 0 * E + (h + 1) * D]           # (S, D)
        k_h = qkv[:, 1 * E + h * D: 1 * E + (h + 1) * D]           # (S, D)
        v_h = qkv[:, 2 * E + h * D: 2 * E + (h + 1) * D]           # (S, D)

        # Scores: contraction over D with K untransposed (no XLU transpose);
        # 1/sqrt(D) already folded into the Q weight columns.
        s = jnp.einsum('qd,kd->qk', q_h, k_h,
                       preferred_element_type=jnp.float32)         # (S, S) f32

        # Softmax over keys in f32; denominator reciprocal on the EUP slot.
        s = s - jnp.max(s, axis=-1, keepdims=True)
        p = jnp.exp(s)
        p = p * pl.reciprocal(jnp.sum(p, axis=-1, keepdims=True), approx=True)
        # TODO(synk): training-mode dropout on p (pltpu.prng_seed + prng_random_bits).

        # PV, then head-merge + output projection fused as an accumulating
        # (S, D) x (D, E) MXU matmul — no (H, S, E) intermediate.
        o_h = jnp.dot(p.astype(v_h.dtype), v_h,
                      preferred_element_type=jnp.float32)          # (S, D) f32
        acc = acc + jnp.dot(o_h.astype(x.dtype), wo_ref[h],
                            preferred_element_type=jnp.float32)    # (S, E) f32

    o_ref[0] = (acc + bo).astype(o_ref.dtype)


def multi_head_attention(x, wqkv, wo, bo, *, num_heads):
    """x: (B, S, E). wqkv: (3E, E) torch layout. wo: (E, E) torch layout. bo: (E,)."""
    B, S, E = x.shape
    H = num_heads
    assert E % H == 0, "embed_dim must be divisible by num_heads"
    D = E // H
    scale = D ** (-0.5)

    # ---- Host-side weight re-arrangement (one-time, outside the kernel) ----
    # nn.Linear computes y = x @ W.T.  Fuse Q/K/V into a single (E, 3E) matrix
    # and fold the 1/sqrt(D) attention scale into the Q columns.
    wqkv_t = wqkv.T.astype(jnp.float32)                            # (E, 3E)
    wqkv_fused = jnp.concatenate(
        [wqkv_t[:, :E] * scale, wqkv_t[:, E:]], axis=1).astype(x.dtype)
    wo_h = wo.T.astype(x.dtype).reshape(H, D, E)                   # per-head rows of Wo^T
    bo2 = bo.reshape(1, E)

    # ---- VMEM budget (dtype-aware, incl. double buffering), for the limit ----
    itemsize = jnp.dtype(x.dtype).itemsize
    est_bytes = (
        2 * 2 * S * E * itemsize                    # x + out blocks, 2 buffers each
        + 2 * (3 * E * E + E * E + E) * itemsize    # weights (pipeline double-buffers)
        + (3 * S * E + 2 * S * S + S * E) * 4       # qkv, per-head scores, accumulator (f32)
    )
    # 32 MiB floor (= v6e/v7x default scoped limit, < v5e/v6e 128 MiB physical),
    # 48 MiB cap to stay under v7x's 64 MiB physical VMEM with headroom.
    vmem_limit = int(min(48 * 2 ** 20, max(32 * 2 ** 20, 4 * est_bytes)))

    kernel = functools.partial(mha_kernel, num_heads=num_heads)

    # Grid: one batch row per step, "parallel" so v7x's 2 TensorCores shard it.
    # Weight BlockSpecs have constant index maps, so they are not re-fetched
    # across steps.  (Single-buffering them via pipeline_mode is a further
    # VMEM saving at large E; not needed at these sizes.)
    return pl.pallas_call(
        kernel,
        out_shape=jax.ShapeDtypeStruct((B, S, E), x.dtype),
        grid_spec=pltpu.PrefetchScalarGridSpec(
            num_scalar_prefetch=0,
            grid=(B,),
            in_specs=[
                pl.BlockSpec((1, S, E), lambda b: (b, 0, 0)),
                pl.BlockSpec((E, 3 * E), lambda b: (0, 0)),
                pl.BlockSpec((H, D, E), lambda b: (0, 0, 0)),
                pl.BlockSpec((1, E), lambda b: (0, 0)),
            ],
            out_specs=pl.BlockSpec((1, S, E), lambda b: (b, 0, 0)),
        ),
        compiler_params=pltpu.CompilerParams(
            dimension_semantics=("parallel",),
            vmem_limit_bytes=vmem_limit),
    )(x, wqkv_fused, wo_h, bo2)


def reference_mha(x, wqkv, wo, bo, *, num_heads):
    """Pure-JAX reference reproducing the PyTorch forward (eval mode)."""
    B, S, E = x.shape
    D = E // num_heads
    scale = D ** (-0.5)
    qkv = x @ wqkv.T                                               # (B, S, 3E)
    q, k, v = jnp.split(qkv, 3, axis=-1)

    def to_heads(t):
        return t.reshape(B, S, num_heads, D).transpose(0, 2, 1, 3)  # (B,H,S,D)

    q, k, v = to_heads(q), to_heads(k), to_heads(v)
    attn = jnp.einsum("bhqd,bhkd->bhqk", q, k) * scale
    attn = jax.nn.softmax(attn, axis=-1)
    out = jnp.einsum("bhqk,bhkd->bhqd", attn, v)
    out = out.transpose(0, 2, 1, 3).reshape(B, S, E)
    return out @ wo.T + bo


if __name__ == "__main__":
    B, S, E = 2, 8, 32
    num_heads = 4

    key = jax.random.PRNGKey(0)
    kx, kqkv, kwo, kbo = jax.random.split(key, 4)

    x = jax.random.normal(kx, (B, S, E), dtype=jnp.float32)

    # Deterministic parameter init (shapes follow nn.Linear conventions).
    bound_qkv = 1.0 / math.sqrt(E)
    wqkv = jax.random.uniform(kqkv, (3 * E, E), jnp.float32,
                              -bound_qkv, bound_qkv)   # qkv_proj.weight
    bound_o = 1.0 / math.sqrt(E)
    wo = jax.random.uniform(kwo, (E, E), jnp.float32, -bound_o, bound_o)
    bo = jax.random.uniform(kbo, (E,), jnp.float32, -bound_o, bound_o)

    out = multi_head_attention(x, wqkv, wo, bo, num_heads=num_heads)
    out = jax.block_until_ready(out)

    ref = reference_mha(x, wqkv, wo, bo, num_heads=num_heads)
    assert out.shape == (B, S, E)
    # Tolerance absorbs the EUP approximate reciprocal used for the softmax
    # normalization (relative error ~1e-4..1e-3) and the host-side scale fold.
    assert jnp.allclose(out, ref, atol=5e-3, rtol=5e-3), \
        f"max abs err = {jnp.max(jnp.abs(out - ref))}"

    print("KERNEL_OK")
</pallas_src>

<mosaic_0001>
module attributes {stable_mosaic.version = 11 : i64} {
  func.func @mha_kernel(%arg0: i32, %arg1: memref<1x8x32xf32, #tpu.memory_space<vmem>>, %arg2: memref<32x96xf32, #tpu.memory_space<vmem>>, %arg3: memref<4x8x32xf32, #tpu.memory_space<vmem>>, %arg4: memref<1x32xf32, #tpu.memory_space<vmem>>, %arg5: memref<1x8x32xf32, #tpu.memory_space<vmem>>) attributes {dimension_semantics = [#tpu.dimension_semantics<parallel>], iteration_bounds = array<i64: 2>, scalar_prefetch = 0 : i64, scratch_operands = 0 : i64, tpu.core_type = #tpu.core_type<tc>, window_params = [{transform_indices = @transform_0, window_bounds = array<i64: 1, 8, 32>}, {pipeline_mode = #tpu.pipeline_mode<synchronous>, transform_indices = @transform_1, window_bounds = array<i64: 32, 96>}, {pipeline_mode = #tpu.pipeline_mode<synchronous>, transform_indices = @transform_2, window_bounds = array<i64: 4, 8, 32>}, {pipeline_mode = #tpu.pipeline_mode<synchronous>, transform_indices = @transform_3, window_bounds = array<i64: 1, 32>}, {transform_indices = @transform_4, window_bounds = array<i64: 1, 8, 32>}]} {
    %c0 = arith.constant 0 : index
    %c0_0 = arith.constant 0 : index
    %c0_1 = arith.constant 0 : index
    %0 = vector.load %arg1[%c0, %c0_0, %c0_1] : memref<1x8x32xf32, #tpu.memory_space<vmem>>, vector<1x8x32xf32>
    %1 = vector.shape_cast %0 : vector<1x8x32xf32> to vector<8x32xf32>
    %c0_2 = arith.constant 0 : index
    %c0_3 = arith.constant 0 : index
    %2 = vector.load %arg2[%c0_2, %c0_3] : memref<32x96xf32, #tpu.memory_space<vmem>>, vector<32x96xf32>
    %c0_4 = arith.constant 0 : index
    %c0_5 = arith.constant 0 : index
    %3 = vector.load %arg4[%c0_4, %c0_5] : memref<1x32xf32, #tpu.memory_space<vmem>>, vector<1x32xf32>
    %cst = arith.constant dense<0.000000e+00> : vector<8x96xf32>
    %4 = tpu.matmul %1, %2, %cst {dimension_numbers = #tpu.dot_dimension_numbers<[1], [0], [0], [1], [0, 0, 1, 1], [], []>} : vector<8x32xf32>, vector<32x96xf32>, vector<8x96xf32> -> vector<8x96xf32>
    %cst_6 = arith.constant 0.000000e+00 : f32
    %5 = vector.broadcast %cst_6 : f32 to vector<8x32xf32>
    %6 = vector.extract_strided_slice %4 {offsets = [0, 0], sizes = [8, 8], strides = [1, 1]} : vector<8x96xf32> to vector<8x8xf32>
    %7 = vector.extract_strided_slice %4 {offsets = [0, 32], sizes = [8, 8], strides = [1, 1]} : vector<8x96xf32> to vector<8x8xf32>
    %8 = vector.extract_strided_slice %4 {offsets = [0, 64], sizes = [8, 8], strides = [1, 1]} : vector<8x96xf32> to vector<8x8xf32>
    "tpu.trace_start"() <{level = 10 : i32, message = "qd,kd->qk"}> : () -> ()
    %cst_7 = arith.constant dense<0.000000e+00> : vector<8x8xf32>
    %9 = tpu.matmul %6, %7, %cst_7 {dimension_numbers = #tpu.dot_dimension_numbers<[1], [1], [0], [0], [0, 0, 1, 0], [], []>} : vector<8x8xf32>, vector<8x8xf32>, vector<8x8xf32> -> vector<8x8xf32>
    "tpu.trace_stop"() : () -> ()
    %cst_8 = arith.constant dense<0xFF800000> : vector<8xf32>
    %10 = vector.multi_reduction <maximumf>, %9, %cst_8 [1] : vector<8x8xf32> to vector<8xf32>
    %11 = vector.shape_cast %10 : vector<8xf32> to vector<8x1xf32>
    %12 = vector.broadcast %11 : vector<8x1xf32> to vector<8x8xf32>
    %13 = arith.subf %9, %12 : vector<8x8xf32>
    %14 = math.exp %13 : vector<8x8xf32>
    %cst_9 = arith.constant dense<0.000000e+00> : vector<8xf32>
    %15 = vector.multi_reduction <add>, %14, %cst_9 [1] : vector<8x8xf32> to vector<8xf32>
    %16 = vector.shape_cast %15 : vector<8xf32> to vector<8x1xf32>
    %17 = tpu.reciprocal %16 {approx = true} : vector<8x1xf32> -> vector<8x1xf32>
    %18 = vector.broadcast %17 : vector<8x1xf32> to vector<8x8xf32>
    %19 = arith.mulf %14, %18 : vector<8x8xf32>
    %cst_10 = arith.constant dense<0.000000e+00> : vector<8x8xf32>
    %20 = tpu.matmul %19, %8, %cst_10 {dimension_numbers = #tpu.dot_dimension_numbers<[1], [0], [0], [1], [0, 0, 1, 1], [], []>} : vector<8x8xf32>, vector<8x8xf32>, vector<8x8xf32> -> vector<8x8xf32>
    %c0_11 = arith.constant 0 : index
    %c0_12 = arith.constant 0 : index
    %c0_13 = arith.constant 0 : index
    %21 = vector.load %arg3[%c0_11, %c0_12, %c0_13] : memref<4x8x32xf32, #tpu.memory_space<vmem>>, vector<1x8x32xf32>
    %22 = vector.shape_cast %21 : vector<1x8x32xf32> to vector<8x32xf32>
    %cst_14 = arith.constant dense<0.000000e+00> : vector<8x32xf32>
    %23 = tpu.matmul %20, %22, %cst_14 {dimension_numbers = #tpu.dot_dimension_numbers<[1], [0], [0], [1], [0, 0, 1, 1], [], []>} : vector<8x8xf32>, vector<8x32xf32>, vector<8x32xf32> -> vector<8x32xf32>
    %24 = arith.addf %5, %23 : vector<8x32xf32>
    %25 = vector.extract_strided_slice %4 {offsets = [0, 8], sizes = [8, 8], strides = [1, 1]} : vector<8x96xf32> to vector<8x8xf32>
    %26 = vector.extract_strided_slice %4 {offsets = [0, 40], sizes = [8, 8], strides = [1, 1]} : vector<8x96xf32> to vector<8x8xf32>
    %27 = vector.extract_strided_slice %4 {offsets = [0, 72], sizes = [8, 8], strides = [1, 1]} : vector<8x96xf32> to vector<8x8xf32>
    "tpu.trace_start"() <{level = 10 : i32, message = "qd,kd->qk"}> : () -> ()
    %cst_15 = arith.constant dense<0.000000e+00> : vector<8x8xf32>
    %28 = tpu.matmul %25, %26, %cst_15 {dimension_numbers = #tpu.dot_dimension_numbers<[1], [1], [0], [0], [0, 0, 1, 0], [], []>} : vector<8x8xf32>, vector<8x8xf32>, vector<8x8xf32> -> vector<8x8xf32>
    "tpu.trace_stop"() : () -> ()
    %cst_16 = arith.constant dense<0xFF800000> : vector<8xf32>
    %29 = vector.multi_reduction <maximumf>, %28, %cst_16 [1] : vector<8x8xf32> to vector<8xf32>
    %30 = vector.shape_cast %29 : vector<8xf32> to vector<8x1xf32>
    %31 = vector.broadcast %30 : vector<8x1xf32> to vector<8x8xf32>
    %32 = arith.subf %28, %31 : vector<8x8xf32>
    %33 = math.exp %32 : vector<8x8xf32>
    %cst_17 = arith.constant dense<0.000000e+00> : vector<8xf32>
    %34 = vector.multi_reduction <add>, %33, %cst_17 [1] : vector<8x8xf32> to vector<8xf32>
    %35 = vector.shape_cast %34 : vector<8xf32> to vector<8x1xf32>
    %36 = tpu.reciprocal %35 {approx = true} : vector<8x1xf32> -> vector<8x1xf32>
    %37 = vector.broadcast %36 : vector<8x1xf32> to vector<8x8xf32>
    %38 = arith.mulf %33, %37 : vector<8x8xf32>
    %cst_18 = arith.constant dense<0.000000e+00> : vector<8x8xf32>
    %39 = tpu.matmul %38, %27, %cst_18 {dimension_numbers = #tpu.dot_dimension_numbers<[1], [0], [0], [1], [0, 0, 1, 1], [], []>} : vector<8x8xf32>, vector<8x8xf32>, vector<8x8xf32> -> vector<8x8xf32>
    %c1 = arith.constant 1 : index
    %c0_19 = arith.constant 0 : index
    %c0_20 = arith.constant 0 : index
    %40 = vector.load %arg3[%c1, %c0_19, %c0_20] : memref<4x8x32xf32, #tpu.memory_space<vmem>>, vector<1x8x32xf32>
    %41 = vector.shape_cast %40 : vector<1x8x32xf32> to vector<8x32xf32>
    %cst_21 = arith.constant dense<0.000000e+00> : vector<8x32xf32>
    %42 = tpu.matmul %39, %41, %cst_21 {dimension_numbers = #tpu.dot_dimension_numbers<[1], [0], [0], [1], [0, 0, 1, 1], [], []>} : vector<8x8xf32>, vector<8x32xf32>, vector<8x32xf32> -> vector<8x32xf32>
    %43 = arith.addf %24, %42 : vector<8x32xf32>
    %44 = vector.extract_strided_slice %4 {offsets = [0, 16], sizes = [8, 8], strides = [1, 1]} : vector<8x96xf32> to vector<8x8xf32>
    %45 = vector.extract_strided_slice %4 {offsets = [0, 48], sizes = [8, 8], strides = [1, 1]} : vector<8x96xf32> to vector<8x8xf32>
    %46 = vector.extract_strided_slice %4 {offsets = [0, 80], sizes = [8, 8], strides = [1, 1]} : vector<8x96xf32> to vector<8x8xf32>
    "tpu.trace_start"() <{level = 10 : i32, message = "qd,kd->qk"}> : () -> ()
    %cst_22 = arith.constant dense<0.000000e+00> : vector<8x8xf32>
    %47 = tpu.matmul %44, %45, %cst_22 {dimension_numbers = #tpu.dot_dimension_numbers<[1], [1], [0], [0], [0, 0, 1, 0], [], []>} : vector<8x8xf32>, vector<8x8xf32>, vector<8x8xf32> -> vector<8x8xf32>
    "tpu.trace_stop"() : () -> ()
    %cst_23 = arith.constant dense<0xFF800000> : vector<8xf32>
    %48 = vector.multi_reduction <maximumf>, %47, %cst_23 [1] : vector<8x8xf32> to vector<8xf32>
    %49 = vector.shape_cast %48 : vector<8xf32> to vector<8x1xf32>
    %50 = vector.broadcast %49 : vector<8x1xf32> to vector<8x8xf32>
    %51 = arith.subf %47, %50 : vector<8x8xf32>
    %52 = math.exp %51 : vector<8x8xf32>
    %cst_24 = arith.constant dense<0.000000e+00> : vector<8xf32>
    %53 = vector.multi_reduction <add>, %52, %cst_24 [1] : vector<8x8xf32> to vector<8xf32>
    %54 = vector.shape_cast %53 : vector<8xf32> to vector<8x1xf32>
    %55 = tpu.reciprocal %54 {approx = true} : vector<8x1xf32> -> vector<8x1xf32>
    %56 = vector.broadcast %55 : vector<8x1xf32> to vector<8x8xf32>
    %57 = arith.mulf %52, %56 : vector<8x8xf32>
    %cst_25 = arith.constant dense<0.000000e+00> : vector<8x8xf32>
    %58 = tpu.matmul %57, %46, %cst_25 {dimension_numbers = #tpu.dot_dimension_numbers<[1], [0], [0], [1], [0, 0, 1, 1], [], []>} : vector<8x8xf32>, vector<8x8xf32>, vector<8x8xf32> -> vector<8x8xf32>
    %c2 = arith.constant 2 : index
    %c0_26 = arith.constant 0 : index
    %c0_27 = arith.constant 0 : index
    %59 = vector.load %arg3[%c2, %c0_26, %c0_27] : memref<4x8x32xf32, #tpu.memory_space<vmem>>, vector<1x8x32xf32>
    %60 = vector.shape_cast %59 : vector<1x8x32xf32> to vector<8x32xf32>
    %cst_28 = arith.constant dense<0.000000e+00> : vector<8x32xf32>
    %61 = tpu.matmul %58, %60, %cst_28 {dimension_numbers = #tpu.dot_dimension_numbers<[1], [0], [0], [1], [0, 0, 1, 1], [], []>} : vector<8x8xf32>, vector<8x32xf32>, vector<8x32xf32> -> vector<8x32xf32>
    %62 = arith.addf %43, %61 : vector<8x32xf32>
    %63 = vector.extract_strided_slice %4 {offsets = [0, 24], sizes = [8, 8], strides = [1, 1]} : vector<8x96xf32> to vector<8x8xf32>
    %64 = vector.extract_strided_slice %4 {offsets = [0, 56], sizes = [8, 8], strides = [1, 1]} : vector<8x96xf32> to vector<8x8xf32>
    %65 = vector.extract_strided_slice %4 {offsets = [0, 88], sizes = [8, 8], strides = [1, 1]} : vector<8x96xf32> to vector<8x8xf32>
    "tpu.trace_start"() <{level = 10 : i32, message = "qd,kd->qk"}> : () -> ()
    %cst_29 = arith.constant dense<0.000000e+00> : vector<8x8xf32>
    %66 = tpu.matmul %63, %64, %cst_29 {dimension_numbers = #tpu.dot_dimension_numbers<[1], [1], [0], [0], [0, 0, 1, 0], [], []>} : vector<8x8xf32>, vector<8x8xf32>, vector<8x8xf32> -> vector<8x8xf32>
    "tpu.trace_stop"() : () -> ()
    %cst_30 = arith.constant dense<0xFF800000> : vector<8xf32>
    %67 = vector.multi_reduction <maximumf>, %66, %cst_30 [1] : vector<8x8xf32> to vector<8xf32>
    %68 = vector.shape_cast %67 : vector<8xf32> to vector<8x1xf32>
    %69 = vector.broadcast %68 : vector<8x1xf32> to vector<8x8xf32>
    %70 = arith.subf %66, %69 : vector<8x8xf32>
    %71 = math.exp %70 : vector<8x8xf32>
    %cst_31 = arith.constant dense<0.000000e+00> : vector<8xf32>
    %72 = vector.multi_reduction <add>, %71, %cst_31 [1] : vector<8x8xf32> to vector<8xf32>
    %73 = vector.shape_cast %72 : vector<8xf32> to vector<8x1xf32>
    %74 = tpu.reciprocal %73 {approx = true} : vector<8x1xf32> -> vector<8x1xf32>
    %75 = vector.broadcast %74 : vector<8x1xf32> to vector<8x8xf32>
    %76 = arith.mulf %71, %75 : vector<8x8xf32>
    %cst_32 = arith.constant dense<0.000000e+00> : vector<8x8xf32>
    %77 = tpu.matmul %76, %65, %cst_32 {dimension_numbers = #tpu.dot_dimension_numbers<[1], [0], [0], [1], [0, 0, 1, 1], [], []>} : vector<8x8xf32>, vector<8x8xf32>, vector<8x8xf32> -> vector<8x8xf32>
    %c3 = arith.constant 3 : index
    %c0_33 = arith.constant 0 : index
    %c0_34 = arith.constant 0 : index
    %78 = vector.load %arg3[%c3, %c0_33, %c0_34] : memref<4x8x32xf32, #tpu.memory_space<vmem>>, vector<1x8x32xf32>
    %79 = vector.shape_cast %78 : vector<1x8x32xf32> to vector<8x32xf32>
    %cst_35 = arith.constant dense<0.000000e+00> : vector<8x32xf32>
    %80 = tpu.matmul %77, %79, %cst_35 {dimension_numbers = #tpu.dot_dimension_numbers<[1], [0], [0], [1], [0, 0, 1, 1], [], []>} : vector<8x8xf32>, vector<8x32xf32>, vector<8x32xf32> -> vector<8x32xf32>
    %81 = arith.addf %62, %80 : vector<8x32xf32>
    %82 = vector.broadcast %3 : vector<1x32xf32> to vector<8x32xf32>
    %83 = arith.addf %81, %82 : vector<8x32xf32>
    %c0_36 = arith.constant 0 : index
    %c0_37 = arith.constant 0 : index
    %c0_38 = arith.constant 0 : index
    %84 = vector.load %arg5[%c0_36, %c0_37, %c0_38] : memref<1x8x32xf32, #tpu.memory_space<vmem>>, vector<1x8x32xf32>
    %85 = vector.shape_cast %84 : vector<1x8x32xf32> to vector<8x32xf32>
    %86 = vector.shape_cast %83 : vector<8x32xf32> to vector<1x8x32xf32>
    tpu.vector_store %arg5[%c0_36, %c0_37, %c0_38], %86 {strides = array<i32>} : memref<1x8x32xf32, #tpu.memory_space<vmem>>, vector<1x8x32xf32>,
    return
  }
  func.func @transform_0(%arg0: i32) -> (i32, i32, i32) {
    %c0_i32 = arith.constant 0 : i32
    %c0_i32_0 = arith.constant 0 : i32
    %c0_i32_1 = arith.constant 0 : i32
    return %arg0, %c0_i32, %c0_i32_0 : i32, i32, i32
  }
  func.func @transform_1(%arg0: i32) -> (i32, i32) {
    %c0_i32 = arith.constant 0 : i32
    %c0_i32_0 = arith.constant 0 : i32
    %c0_i32_1 = arith.constant 0 : i32
    return %c0_i32, %c0_i32_0 : i32, i32
  }
  func.func @transform_2(%arg0: i32) -> (i32, i32, i32) {
    %c0_i32 = arith.constant 0 : i32
    %c0_i32_0 = arith.constant 0 : i32
    %c0_i32_1 = arith.constant 0 : i32
    %c0_i32_2 = arith.constant 0 : i32
    return %c0_i32, %c0_i32_0, %c0_i32_1 : i32, i32, i32
  }
  func.func @transform_3(%arg0: i32) -> (i32, i32) {
    %c0_i32 = arith.constant 0 : i32
    %c0_i32_0 = arith.constant 0 : i32
    %c0_i32_1 = arith.constant 0 : i32
    return %c0_i32, %c0_i32_0 : i32, i32
  }
  func.func @transform_4(%arg0: i32) -> (i32, i32, i32) {
    %c0_i32 = arith.constant 0 : i32
    %c0_i32_0 = arith.constant 0 : i32
    %c0_i32_1 = arith.constant 0 : i32
    return %arg0, %c0_i32, %c0_i32_0 : i32, i32, i32
  }
}

</mosaic_0001>

<llo_original>
// kernel: tpu_custom_call.1
$region0: #{tpu_custom_call.1}
  #allocation0 [shape = 'u32[]', space=smem, size = 0x4, offset = 0x4, fixed_abs, tag = 'smem constant byte address 0x4 - core index']
  #allocation1 [shape = 'u32[144,128]{1,0:T(1,128)}', space=vmem, size = 0x12000, scoped, tag = 'internal scratch']
  %s0 = inlined_call_operand.hbm [shape: f32[2,8,32], index: 0, kind: input, shape index: {}]
  %s1 = inlined_call_operand.hbm [shape: f32[32,96], index: 1, kind: input, shape index: {}]
  %s2 = inlined_call_operand.hbm [shape: f32[4,8,32], index: 2, kind: input, shape index: {}]
  %s3 = inlined_call_operand.vmem [shape: f32[1,32], index: 3, kind: input, shape index: {}]
  %s4 = inlined_call_operand.hbm [shape: f32[2,8,32], index: 4, kind: output, shape index: {}]
  %s5 = sld [smem:[#allocation0]]
  $region61: #{tpu_custom_call.1} parent=0
    _
  %s7 = ssub.s32 1, %s5
  %s8 = scalar_select 0, %s7, %s5
  $region1: #{tpu_custom_call.1} parent=0
    #allocation2 [shape = 'u8[8192]{0}', space=vmem, size = 0x2000, scoped, tag = 'input window, operand 0']
    #allocation3 [shape = 's32[2]{0}', space=sflag, size = 0x8, scoped, tag = 'scoped memory for tpu_custom_call.1']
    #allocation4 [shape = 's32[2]{0}', space=sflag, size = 0x8, scoped, tag = 'scoped memory for tpu_custom_call.1']
    #allocation5 [shape = 'u8[16384]{0}', space=vmem, size = 0x4000, scoped, tag = 'input window, operand 1, single buffered']
    #allocation6 [shape = 's32[1]{0}', space=sflag, size = 0x4, scoped, tag = 'scoped memory for tpu_custom_call.1']
    #allocation7 [shape = 'u8[16384]{0}', space=vmem, size = 0x4000, scoped, tag = 'input window, operand 2, single buffered']
    #allocation8 [shape = 'u8[8192]{0}', space=vmem, size = 0x2000, scoped, tag = 'output window, operand 0']
    %9 = vsyncpa [#allocation3], 0
    %s10 = scalar_lea.sflag [#allocation3], 1
    %11 = vsyncpa %s10, 0
    %12 = vsyncpa [#allocation6], 0
    %13 = vsyncpa [#allocation4], 0
    %s14 = scalar_lea.sflag [#allocation4], 1
    %15 = vsyncpa %s14, 0
    loop: start=0, step=1, limit=4
    $region2: #{tpu_custom_call.1} parent=1 // loop_pre_header
      _
    $region3: #{tpu_custom_call.1} parent=1 // loop_header
      %s17 = sphi 0, %s21
      %p18 = scmp.ge.s32.totalorder %s17, 4
      %s27 = sphi 0, %s29
      %s30 = sphi 0, %s27
      %s31 = sphi 0, %s30
      %s47 = sphi 0, %s31
      %s51 = sphi 0, %s51
      %s53 = sphi 0, %s51
      %s54 = sphi 0, %s53
      %s68 = sphi 0, %s54
      %s72 = sphi 0, %s72
      %s74 = sphi 0, %s72
      %s75 = sphi 0, %s74
      %s89 = sphi 0, %s75
      %s93 = sphi 0, %s93
      %s95 = sphi 0, %s93
      %s96 = sphi 0, %s95
      %s110 = sphi 0, %s96
      %s116 = sphi 0, %s118
      %s119 = sphi 0, %s116
      %s120 = sphi 0, %s119
      %s136 = sphi 0, %s120
    $region4: #{tpu_custom_call.1} parent=1 // loop_header_branch
      %20 = sbr.rel (%p18) target = $region8
    $region5: #{tpu_custom_call.1} parent=1 // loop_body
      %s22 = ssub.s32 %s17, 1
      %s23 = ssub.s32 %s17, 2
      %s24 = sadd.s32 %s17, 1
      %s25 = ssub.s32 %s17, %s24
      %p26 = scmp.eq.s32.totalorder %s25, 0
      %s28 = sadd.s32 %s27, 1
      %s29 = scalar_select %p26, %s27, %s28
      %p32 = pneg %p26
      %p33 = scmp.eq.s32.totalorder %s17, 1
      %p34 = por %p32, %p33
      %p35 = scmp.ne.s32.totalorder %s27, %s30
      %p36 = scmp.eq.s32.totalorder %s17, 0
      %p37 = por %p35, %p36
      %p38 = scmp.ne.s32.totalorder %s27, %s30
      %p39 = scmp.eq.s32.totalorder %s22, 1
      %p40 = por %p38, %p39
      %p41 = scmp.ne.s32.totalorder %s30, %s31
      %p42 = scmp.eq.s32.totalorder %s22, 0
      %p43 = por %p41, %p42
      %p44 = scmp.ne.s32.totalorder %s30, %s31
      %p45 = scmp.eq.s32.totalorder %s23, 1
      %p46 = por %p44, %p45
      %p48 = scmp.ne.s32.totalorder %s31, %s47
      %p49 = scmp.eq.s32.totalorder %s23, 0
      %p50 = por %p48, %p49
      %s52 = sadd.s32 %s51, 1
      %p55 = scmp.eq.s32.totalorder %s17, 1
      %p56 = scmp.ne.s32.totalorder %s51, %s53
      %p57 = scmp.eq.s32.totalorder %s17, 0
      %p58 = por %p56, %p57
      %p59 = scmp.ne.s32.totalorder %s51, %s53
      %p60 = scmp.eq.s32.totalorder %s22, 1
      %p61 = por %p59, %p60
      %p62 = scmp.ne.s32.totalorder %s53, %s54
      %p63 = scmp.eq.s32.totalorder %s22, 0
      %p64 = por %p62, %p63
      %p65 = scmp.ne.s32.totalorder %s53, %s54
      %p66 = scmp.eq.s32.totalorder %s23, 1
      %p67 = por %p65, %p66
      %p69 = scmp.ne.s32.totalorder %s54, %s68
      %p70 = scmp.eq.s32.totalorder %s23, 0
      %p71 = por %p69, %p70
      %s73 = sadd.s32 %s72, 1
      %p76 = scmp.eq.s32.totalorder %s17, 1
      %p77 = scmp.ne.s32.totalorder %s72, %s74
      %p78 = scmp.eq.s32.totalorder %s17, 0
      %p79 = por %p77, %p78
      %p80 = scmp.ne.s32.totalorder %s72, %s74
      %p81 = scmp.eq.s32.totalorder %s22, 1
      %p82 = por %p80, %p81
      %p83 = scmp.ne.s32.totalorder %s74, %s75
      %p84 = scmp.eq.s32.totalorder %s22, 0
      %p85 = por %p83, %p84
      %p86 = scmp.ne.s32.totalorder %s74, %s75
      %p87 = scmp.eq.s32.totalorder %s23, 1
      %p88 = por %p86, %p87
      %p90 = scmp.ne.s32.totalorder %s75, %s89
      %p91 = scmp.eq.s32.totalorder %s23, 0
      %p92 = por %p90, %p91
      %s94 = sadd.s32 %s93, 1
      %p97 = scmp.eq.s32.totalorder %s17, 1
      %p98 = scmp.ne.s32.totalorder %s93, %s95
      %p99 = scmp.eq.s32.totalorder %s17, 0
      %p100 = por %p98, %p99
      %p101 = scmp.ne.s32.totalorder %s93, %s95
      %p102 = scmp.eq.s32.totalorder %s22, 1
      %p103 = por %p101, %p102
      %p104 = scmp.ne.s32.totalorder %s95, %s96
      %p105 = scmp.eq.s32.totalorder %s22, 0
      %p106 = por %p104, %p105
      %p107 = scmp.ne.s32.totalorder %s95, %s96
      %p108 = scmp.eq.s32.totalorder %s23, 1
      %p109 = por %p107, %p108
      %p111 = scmp.ne.s32.totalorder %s96, %s110
      %p112 = scmp.eq.s32.totalorder %s23, 0
      %p113 = por %p111, %p112
      %s114 = ssub.s32 %s17, %s24
      %p115 = scmp.eq.s32.totalorder %s114, 0
      %s117 = sadd.s32 %s116, 1
      %s118 = scalar_select %p115, %s116, %s117
      %p121 = pneg %p115
      %p122 = scmp.eq.s32.totalorder %s17, 1
      %p123 = por %p121, %p122
      %p124 = scmp.ne.s32.totalorder %s116, %s119
      %p125 = scmp.eq.s32.totalorder %s17, 0
      %p126 = por %p124, %p125
      %p127 = scmp.ne.s32.totalorder %s116, %s119
      %p128 = scmp.eq.s32.totalorder %s22, 1
      %p129 = por %p127, %p128
      %p130 = scmp.ne.s32.totalorder %s119, %s120
      %p131 = scmp.eq.s32.totalorder %s22, 0
      %p132 = por %p130, %p131
      %p133 = scmp.ne.s32.totalorder %s119, %s120
      %p134 = scmp.eq.s32.totalorder %s23, 1
      %p135 = por %p133, %p134
      %p137 = scmp.ne.s32.totalorder %s120, %s136
      %p138 = scmp.eq.s32.totalorder %s23, 0
      %p139 = por %p137, %p138
      %p140 = scmp.le.s32.totalorder 1, %s17
      %p141 = scmp.lt.s32.totalorder %s17, 3
      %p142 = pnand %p140, %p141
      %p143 = pneg %p142
      // Predicated region
      $region9: #{tpu_custom_call.1} parent=5 // pred_check
        _
      $region10: #{tpu_custom_call.1} parent=5 // pred_check_branch
        %145 = sbr.rel (%p142) target = $region12
      $region11: #{tpu_custom_call.1} parent=5 // pred_region
        %s146 = ssub.s32 %s17, 1
        // Predicated region
        $region13: #{tpu_custom_call.1} parent=11 // pred_check
          %p147 = pneg %p64
        $region14: #{tpu_custom_call.1} parent=11 // pred_check_branch
          %149 = sbr.rel (%p147) target = $region16
        $region15: #{tpu_custom_call.1} parent=11 // pred_region
          %s151 = ssub.s32 512, 512
          %152 = vsyncadd [#allocation6], %s151
          %s153 = sshll.u32 [#allocation5], 4
          %s154 = int_to_ptr.vmem [resolvable:$true] %s153
          %159 = dma.hbm_to_vmem [thread:$0]  %s1, 512, %s154, [#allocation6], 128, 128, 8
        $region16: #{tpu_custom_call.1} parent=11 // pred_fallthru
          _
        // Predicated region
        $region17: #{tpu_custom_call.1} parent=11 // pred_check
          %p160 = pneg %p85
        $region18: #{tpu_custom_call.1} parent=11 // pred_check_branch
          %162 = sbr.rel (%p160) target = $region20
        $region19: #{tpu_custom_call.1} parent=11 // pred_region
          %s164 = ssub.s32 512, 512
          %165 = vsyncadd [#allocation6], %s164
          %s166 = sshll.u32 [#allocation7], 4
          %s167 = int_to_ptr.vmem [resolvable:$true] %s166
          %172 = dma.hbm_to_vmem [thread:$0]  %s2, 512, %s167, [#allocation6], 128, 128, 8
        $region20: #{tpu_custom_call.1} parent=11 // pred_fallthru
          _
        // Predicated region
        $region21: #{tpu_custom_call.1} parent=11 // pred_check
          %p173 = pneg %p106
        $region22: #{tpu_custom_call.1} parent=11 // pred_check_branch
          %175 = sbr.rel (%p173) target = $region24
        $region23: #{tpu_custom_call.1} parent=11 // pred_region
          _
        $region24: #{tpu_custom_call.1} parent=11 // pred_fallthru
          _
      $region12: #{tpu_custom_call.1} parent=5 // pred_fallthru
        _
      %p176 = scmp.lt.s32.totalorder %s17, 2
      // Predicated region
      $region25: #{tpu_custom_call.1} parent=5 // pred_check
        %p177 = pneg %p176
      $region26: #{tpu_custom_call.1} parent=5 // pred_check_branch
        %179 = sbr.rel (%p177) target = $region28
      $region27: #{tpu_custom_call.1} parent=5 // pred_region
        // Predicated region
        $region29: #{tpu_custom_call.1} parent=27 // pred_check
          %p180 = pneg %p37
        $region30: #{tpu_custom_call.1} parent=27 // pred_check_branch
          %182 = sbr.rel (%p180) target = $region32
        $region31: #{tpu_custom_call.1} parent=27 // pred_region
          %s183 = sand.u32 %s27, 1
          %s184 = scalar_lea.sflag [#allocation3], %s183
          %s185 = sand.u32 %s27, 1
          %s186 = smul.addr %s185, 8
          %s187 = scalar_lea.vmem [#allocation2], %s186
          %s189 = ssub.s32 128, 128
          %190 = vsyncadd %s184, %s189
          %s191 = smul.addr %s17, 128
          %s192 = scalar_lea.hbm %s0, %s191
          %s194 = sshll.u32 %s187, 4
          %s195 = int_to_ptr.vmem [resolvable:$true] %s194
          %197 = dma.hbm_to_vmem [thread:$0]  %s192, 128, %s195, %s184
        $region32: #{tpu_custom_call.1} parent=27 // pred_fallthru
          _
      $region28: #{tpu_custom_call.1} parent=5 // pred_fallthru
        _
      %p198 = scmp.le.s32.totalorder 1, %s17
      %p199 = scmp.lt.s32.totalorder %s17, 3
      %p200 = pnand %p198, %p199
      %p201 = pneg %p200
      // Predicated region
      $region33: #{tpu_custom_call.1} parent=5 // pred_check
        _
      $region34: #{tpu_custom_call.1} parent=5 // pred_check_branch
        %203 = sbr.rel (%p200) target = $region36
      $region35: #{tpu_custom_call.1} parent=5 // pred_region
        %s204 = ssub.s32 %s17, 1
        %s205 = sand.u32 %s30, 1
        %s206 = scalar_lea.sflag [#allocation3], %s205
        %s207 = sand.u32 %s30, 1
        %s208 = smul.addr %s207, 8
        %s209 = scalar_lea.vmem [#allocation2], %s208
        // Predicated region
        $region37: #{tpu_custom_call.1} parent=35 // pred_check
          %p210 = pneg %p43
        $region38: #{tpu_custom_call.1} parent=35 // pred_check_branch
          %212 = sbr.rel (%p210) target = $region40
        $region39: #{tpu_custom_call.1} parent=35 // pred_region
          %213 = dma.done %s206, 128
        $region40: #{tpu_custom_call.1} parent=35 // pred_fallthru
          _
        // Predicated region
        $region41: #{tpu_custom_call.1} parent=35 // pred_check
          %p214 = pneg %p64
        $region42: #{tpu_custom_call.1} parent=35 // pred_check_branch
          %216 = sbr.rel (%p214) target = $region44
        $region43: #{tpu_custom_call.1} parent=35 // pred_region
          %217 = dma.done [#allocation6], 512
        $region44: #{tpu_custom_call.1} parent=35 // pred_fallthru
          _
        // Predicated region
        $region45: #{tpu_custom_call.1} parent=35 // pred_check
          %p218 = pneg %p85
        $region46: #{tpu_custom_call.1} parent=35 // pred_check_branch
          %220 = sbr.rel (%p218) target = $region48
        $region47: #{tpu_custom_call.1} parent=35 // pred_region
          %221 = dma.done [#allocation6], 512
        $region48: #{tpu_custom_call.1} parent=35 // pred_fallthru
          _
        %s222 = sand.u32 %s30, 1
        %s223 = scalar_lea.sflag [#allocation3], %s222
        %s224 = sand.u32 %s30, 1
        %s225 = smul.addr %s224, 8
        %s226 = scalar_lea.vmem [#allocation2], %s225
        %p227 = pneg %p43
        %p228 = pneg %p40
        %p229 = pneg %p64
        %p230 = pneg %p61
        %p231 = pneg %p85
        %p232 = pneg %p82
        %p233 = pneg %p106
        %p234 = pneg %p103
        %p235 = pneg %p132
        %p236 = pneg %p129
        %s237 = sand.u32 %s119, 1
        %s238 = scalar_lea.sflag [#allocation4], %s237
        %s239 = sand.u32 %s119, 1
        %s240 = smul.addr %s239, 8
        %s241 = scalar_lea.vmem [#allocation8], %s240
        %v242 = vld [vmem:[%s209] sm:$0xff]
        %v243 = vld [vmem:[#allocation5] sm:$0xff]
        %v244 = vld [vmem:[#allocation5 + $0x8] sm:$0xff]
        %v245 = vld [vmem:[#allocation5 + $0x10] sm:$0xff]
        %v246 = vld [vmem:[#allocation5 + $0x18] sm:$0xff]
        %v247 = vld [vmem:[%s3] sm:$0x1]
        %vm248 = vcmask 261120
        %v250 = vsel %vm248, %v242, 0
        %252 = vmatprep.subr.mxu0 0.0
        %253 = vmatpush1.msra.mxu0 %v243
        %254 = vmatprep.subr.mxu0 0.0
        %255 = vmatpush1.msra.mxu0 %v244
        %256 = vmatprep.subr.mxu0 0.0
        %257 = vmatpush1.msra.mxu0 %v245
        %258 = vmatprep.subr.mxu0 0.0
        %259 = vmatpush1.msra.mxu0 %v246
        %260 = vmatprep.subr.mxu0 0.0
        %261 = vmatpush1.msra.mxu0 0.0
        %262 = vmatprep.subr.mxu0 0.0
        %263 = vmatpush1.msra.mxu0 0.0
        %264 = vmatprep.subr.mxu0 0.0
        %265 = vmatpush1.msra.mxu0 0.0
        %266 = vmatprep.subr.mxu0 0.0
        %267 = vmatpush1.msra.mxu0 0.0
        %268 = vmatprep.subr.mxu0 0.0
        %269 = vmatpush1.msra.mxu0 0.0
        %270 = vmatprep.subr.mxu0 0.0
        %271 = vmatpush1.msra.mxu0 0.0
        %272 = vmatprep.subr.mxu0 0.0
        %273 = vmatpush1.msra.mxu0 0.0
        %274 = vmatprep.subr.mxu0 0.0
        %275 = vmatpush1.msra.mxu0 0.0
        %276 = vmatprep.subr.mxu0 0.0
        %277 = vmatpush1.msra.mxu0 0.0
        %278 = vmatprep.subr.mxu0 0.0
        %279 = vmatpush1.msra.mxu0 0.0
        %280 = vmatprep.subr.mxu0 0.0
        %281 = vmatpush1.msra.mxu0 0.0
        %282 = vmatprep.subr.mxu0 0.0
        %283 = vmatpush1.msra.mxu0 0.0
        %284 = vmatprep.subr.mxu0 0.0
        %285 = vmatpush1.msra.mxu0 0.0
        %286 = vmatprep.subr.mxu0 0.0
        %287 = vmatpush1.msra.mxu0 0.0
        %288 = vmatprep.subr.mxu0 0.0
        %289 = vmatpush1.msra.mxu0 0.0
        %290 = vmatprep.subr.mxu0 0.0
        %291 = vmatpush1.msra.mxu0 0.0
        %292 = vmatprep.subr.mxu0 0.0
        %293 = vmatpush1.msra.mxu0 0.0
        %294 = vmatprep.subr.mxu0 0.0
        %295 = vmatpush1.msra.mxu0 0.0
        %296 = vmatprep.subr.mxu0 0.0
        %297 = vmatpush1.msra.mxu0 0.0
        %298 = vmatprep.subr.mxu0 0.0
        %299 = vmatpush1.msra.mxu0 0.0
        %300 = vmatprep.subr.mxu0 0.0
        %301 = vmatpush1.msra.mxu0 0.0
        %302 = vmatprep.subr.mxu0 0.0
        %303 = vmatpush1.msra.mxu0 0.0
        %304 = vmatprep.subr.mxu0 0.0
        %305 = vmatpush1.msra.mxu0 0.0
        %306 = vmatprep.subr.mxu0 0.0
        %307 = vmatpush1.msra.mxu0 0.0
        %308 = vmatprep.subr.mxu0 0.0
        %309 = vmatpush1.msra.mxu0 0.0
        %310 = vmatprep.subr.mxu0 0.0
        %311 = vmatpush1.msra.mxu0 0.0
        %312 = vmatprep.subr.mxu0 0.0
        %313 = vmatpush1.msra.mxu0 0.0
        %314 = vmatprep.subr.mxu0 0.0
        %315 = vmatpush1.msra.mxu0 0.0
        %316 = vmatprep.mubr.f32.mxu0 0.0
        %317 = vmatmul.mubr.f32.gmra.mrb[0].mxu0 %v250
        %v318 = vpop.f32.mrb[0].mxu0
        %v319 = vadd.f32 0.0, %v318
        %v320 = vpop.f32.mrb[0].mxu0
        %321 = vdwg.mxu0
        %323 = vrot.lane.b32.xlu0 %v319, 96
        %v324 = vpop.permute.xlu0 %323
        %vm325 = vcmask 64512
        %v326 = vsel %vm325, %v319, 0
        %v328 = vsel %vm325, %v324, 0
        %330 = vmatprep.subr.mxu0 0.0
        %331 = vmatpush1.xpose.msra.mxu0 %v328
        %332 = vmatprep.subr.mxu0 0.0
        %333 = vmatpush1.xpose.msra.mxu0 0.0
        %334 = vmatprep.subr.mxu0 0.0
        %335 = vmatpush1.xpose.msra.mxu0 0.0
        %336 = vmatprep.subr.mxu0 0.0
        %337 = vmatpush1.xpose.msra.mxu0 0.0
        %338 = vmatprep.subr.mxu0 0.0
        %339 = vmatpush1.xpose.msra.mxu0 0.0
        %340 = vmatprep.subr.mxu0 0.0
        %341 = vmatpush1.xpose.msra.mxu0 0.0
        %342 = vmatprep.subr.mxu0 0.0
        %343 = vmatpush1.xpose.msra.mxu0 0.0
        %344 = vmatprep.subr.mxu0 0.0
        %345 = vmatpush1.xpose.msra.mxu0 0.0
        %346 = vmatprep.subr.mxu0 0.0
        %347 = vmatpush1.xpose.msra.mxu0 0.0
        %348 = vmatprep.subr.mxu0 0.0
        %349 = vmatpush1.xpose.msra.mxu0 0.0
        %350 = vmatprep.subr.mxu0 0.0
        %351 = vmatpush1.xpose.msra.mxu0 0.0
        %352 = vmatprep.subr.mxu0 0.0
        %353 = vmatpush1.xpose.msra.mxu0 0.0
        %354 = vmatprep.subr.mxu0 0.0
        %355 = vmatpush1.xpose.msra.mxu0 0.0
        %356 = vmatprep.subr.mxu0 0.0
        %357 = vmatpush1.xpose.msra.mxu0 0.0
        %358 = vmatprep.subr.mxu0 0.0
        %359 = vmatpush1.xpose.msra.mxu0 0.0
        %360 = vmatprep.subr.mxu0 0.0
        %361 = vmatpush1.xpose.msra.mxu0 0.0
        %362 = vmatprep.subr.mxu0 0.0
        %363 = vmatpush1.xpose.msra.mxu0 0.0
        %364 = vmatprep.subr.mxu0 0.0
        %365 = vmatpush1.xpose.msra.mxu0 0.0
        %366 = vmatprep.subr.mxu0 0.0
        %367 = vmatpush1.xpose.msra.mxu0 0.0
        %368 = vmatprep.subr.mxu0 0.0
        %369 = vmatpush1.xpose.msra.mxu0 0.0
        %370 = vmatprep.subr.mxu0 0.0
        %371 = vmatpush1.xpose.msra.mxu0 0.0
        %372 = vmatprep.subr.mxu0 0.0
        %373 = vmatpush1.xpose.msra.mxu0 0.0
        %374 = vmatprep.subr.mxu0 0.0
        %375 = vmatpush1.xpose.msra.mxu0 0.0
        %376 = vmatprep.subr.mxu0 0.0
        %377 = vmatpush1.xpose.msra.mxu0 0.0
        %378 = vmatprep.subr.mxu0 0.0
        %379 = vmatpush1.xpose.msra.mxu0 0.0
        %380 = vmatprep.subr.mxu0 0.0
        %381 = vmatpush1.xpose.msra.mxu0 0.0
        %382 = vmatprep.subr.mxu0 0.0
        %383 = vmatpush1.xpose.msra.mxu0 0.0
        %384 = vmatprep.subr.mxu0 0.0
        %385 = vmatpush1.xpose.msra.mxu0 0.0
        %386 = vmatprep.subr.mxu0 0.0
        %387 = vmatpush1.xpose.msra.mxu0 0.0
        %388 = vmatprep.subr.mxu0 0.0
        %389 = vmatpush1.xpose.msra.mxu0 0.0
        %390 = vmatprep.subr.mxu0 0.0
        %391 = vmatpush1.xpose.msra.mxu0 0.0
        %392 = vmatprep.subr.mxu0 0.0
        %393 = vmatpush1.xpose.msra.mxu0 0.0
        %394 = vmatprep.mubr.f32.mxu0 0.0
        %395 = vmatmul.mubr.f32.gmra.mrb[0].mxu0 %v326
        %v396 = vpop.f32.mrb[0].mxu0
        %v397 = vadd.f32 0.0, %v396
        %v398 = vpop.f32.mrb[0].mxu0
        %399 = vdwg.mxu0
        %v400 = vsel %vm325, %v397, -inf
        %401 = vmax.xlane.f32.xlu0 %v400
        %v402 = vpop.xlane.xlu0 %401
        %v403 = vsub.f32 %v397, %v402
        %v404 = vmul.f32 %v403, 1.442695
        %v405 = vpow.pop %v404
        %v406 = vsel %vm325, %v405, 0.0
        %407 = vadd.xlane.f32.xlu0 %v406
        %v408 = vpop.xlane.xlu0 %407
        %v409 = vrcp.pop %v408
        %v410 = vmul.f32 %v405, %v409
        %411 = vrot.lane.b32.xlu0 %v319, 64
        %v412 = vpop.permute.xlu0 %411
        %v415 = vsel %vm325, %v410, 0
        %417 = vmatprep.subr.mxu0 0.0
        %418 = vmatpush1.msra.mxu0 %v412
        %419 = vmatprep.subr.mxu0 0.0
        %420 = vmatpush1.msra.mxu0 0.0
        %421 = vmatprep.subr.mxu0 0.0
        %422 = vmatpush1.msra.mxu0 0.0
        %423 = vmatprep.subr.mxu0 0.0
        %424 = vmatpush1.msra.mxu0 0.0
        %425 = vmatprep.subr.mxu0 0.0
        %426 = vmatpush1.msra.mxu0 0.0
        %427 = vmatprep.subr.mxu0 0.0
        %428 = vmatpush1.msra.mxu0 0.0
        %429 = vmatprep.subr.mxu0 0.0
        %430 = vmatpush1.msra.mxu0 0.0
        %431 = vmatprep.subr.mxu0 0.0
        %432 = vmatpush1.msra.mxu0 0.0
        %433 = vmatprep.subr.mxu0 0.0
        %434 = vmatpush1.msra.mxu0 0.0
        %435 = vmatprep.subr.mxu0 0.0
        %436 = vmatpush1.msra.mxu0 0.0
        %437 = vmatprep.subr.mxu0 0.0
        %438 = vmatpush1.msra.mxu0 0.0
        %439 = vmatprep.subr.mxu0 0.0
        %440 = vmatpush1.msra.mxu0 0.0
        %441 = vmatprep.subr.mxu0 0.0
        %442 = vmatpush1.msra.mxu0 0.0
        %443 = vmatprep.subr.mxu0 0.0
        %444 = vmatpush1.msra.mxu0 0.0
        %445 = vmatprep.subr.mxu0 0.0
        %446 = vmatpush1.msra.mxu0 0.0
        %447 = vmatprep.subr.mxu0 0.0
        %448 = vmatpush1.msra.mxu0 0.0
        %449 = vmatprep.subr.mxu0 0.0
        %450 = vmatpush1.msra.mxu0 0.0
        %451 = vmatprep.subr.mxu0 0.0
        %452 = vmatpush1.msra.mxu0 0.0
        %453 = vmatprep.subr.mxu0 0.0
        %454 = vmatpush1.msra.mxu0 0.0
        %455 = vmatprep.subr.mxu0 0.0
        %456 = vmatpush1.msra.mxu0 0.0
        %457 = vmatprep.subr.mxu0 0.0
        %458 = vmatpush1.msra.mxu0 0.0
        %459 = vmatprep.subr.mxu0 0.0
        %460 = vmatpush1.msra.mxu0 0.0
        %461 = vmatprep.subr.mxu0 0.0
        %462 = vmatpush1.msra.mxu0 0.0
        %463 = vmatprep.subr.mxu0 0.0
        %464 = vmatpush1.msra.mxu0 0.0
        %465 = vmatprep.subr.mxu0 0.0
        %466 = vmatpush1.msra.mxu0 0.0
        %467 = vmatprep.subr.mxu0 0.0
        %468 = vmatpush1.msra.mxu0 0.0
        %469 = vmatprep.subr.mxu0 0.0
        %470 = vmatpush1.msra.mxu0 0.0
        %471 = vmatprep.subr.mxu0 0.0
        %472 = vmatpush1.msra.mxu0 0.0
        %473 = vmatprep.subr.mxu0 0.0
        %474 = vmatpush1.msra.mxu0 0.0
        %475 = vmatprep.subr.mxu0 0.0
        %476 = vmatpush1.msra.mxu0 0.0
        %477 = vmatprep.subr.mxu0 0.0
        %478 = vmatpush1.msra.mxu0 0.0
        %479 = vmatprep.subr.mxu0 0.0
        %480 = vmatpush1.msra.mxu0 0.0
        %481 = vmatprep.mubr.f32.mxu0 0.0
        %482 = vmatmul.mubr.f32.gmra.mrb[0].mxu0 %v415
        %v483 = vpop.f32.mrb[0].mxu0
        %v484 = vadd.f32 0.0, %v483
        %v485 = vpop.f32.mrb[0].mxu0
        %486 = vdwg.mxu0
        %v487 = vld [vmem:[#allocation7] sm:$0xff]
        %488 = vrot.lane.b32.xlu0 %v319, 120
        %v489 = vpop.permute.xlu0 %488
        %490 = vrot.lane.b32.xlu0 %v319, 88
        %v491 = vpop.permute.xlu0 %490
        %v492 = vsel %vm325, %v489, 0
        %v494 = vsel %vm325, %v491, 0
        %496 = vmatprep.subr.mxu0 0.0
        %497 = vmatpush1.xpose.msra.mxu0 %v494
        %498 = vmatprep.subr.mxu0 0.0
        %499 = vmatpush1.xpose.msra.mxu0 0.0
        %500 = vmatprep.subr.mxu0 0.0
        %501 = vmatpush1.xpose.msra.mxu0 0.0
        %502 = vmatprep.subr.mxu0 0.0
        %503 = vmatpush1.xpose.msra.mxu0 0.0
        %504 = vmatprep.subr.mxu0 0.0
        %505 = vmatpush1.xpose.msra.mxu0 0.0
        %506 = vmatprep.subr.mxu0 0.0
        %507 = vmatpush1.xpose.msra.mxu0 0.0
        %508 = vmatprep.subr.mxu0 0.0
        %509 = vmatpush1.xpose.msra.mxu0 0.0
        %510 = vmatprep.subr.mxu0 0.0
        %511 = vmatpush1.xpose.msra.mxu0 0.0
        %512 = vmatprep.subr.mxu0 0.0
        %513 = vmatpush1.xpose.msra.mxu0 0.0
        %514 = vmatprep.subr.mxu0 0.0
        %515 = vmatpush1.xpose.msra.mxu0 0.0
        %516 = vmatprep.subr.mxu0 0.0
        %517 = vmatpush1.xpose.msra.mxu0 0.0
        %518 = vmatprep.subr.mxu0 0.0
        %519 = vmatpush1.xpose.msra.mxu0 0.0
        %520 = vmatprep.subr.mxu0 0.0
        %521 = vmatpush1.xpose.msra.mxu0 0.0
        %522 = vmatprep.subr.mxu0 0.0
        %523 = vmatpush1.xpose.msra.mxu0 0.0
        %524 = vmatprep.subr.mxu0 0.0
        %525 = vmatpush1.xpose.msra.mxu0 0.0
        %526 = vmatprep.subr.mxu0 0.0
        %527 = vmatpush1.xpose.msra.mxu0 0.0
        %528 = vmatprep.subr.mxu0 0.0
        %529 = vmatpush1.xpose.msra.mxu0 0.0
        %530 = vmatprep.subr.mxu0 0.0
        %531 = vmatpush1.xpose.msra.mxu0 0.0
        %532 = vmatprep.subr.mxu0 0.0
        %533 = vmatpush1.xpose.msra.mxu0 0.0
        %534 = vmatprep.subr.mxu0 0.0
        %535 = vmatpush1.xpose.msra.mxu0 0.0
        %536 = vmatprep.subr.mxu0 0.0
        %537 = vmatpush1.xpose.msra.mxu0 0.0
        %538 = vmatprep.subr.mxu0 0.0
        %539 = vmatpush1.xpose.msra.mxu0 0.0
        %540 = vmatprep.subr.mxu0 0.0
        %541 = vmatpush1.xpose.msra.mxu0 0.0
        %542 = vmatprep.subr.mxu0 0.0
        %543 = vmatpush1.xpose.msra.mxu0 0.0
        %544 = vmatprep.subr.mxu0 0.0
        %545 = vmatpush1.xpose.msra.mxu0 0.0
        %546 = vmatprep.subr.mxu0 0.0
        %547 = vmatpush1.xpose.msra.mxu0 0.0
        %548 = vmatprep.subr.mxu0 0.0
        %549 = vmatpush1.xpose.msra.mxu0 0.0
        %550 = vmatprep.subr.mxu0 0.0
        %551 = vmatpush1.xpose.msra.mxu0 0.0
        %552 = vmatprep.subr.mxu0 0.0
        %553 = vmatpush1.xpose.msra.mxu0 0.0
        %554 = vmatprep.subr.mxu0 0.0
        %555 = vmatpush1.xpose.msra.mxu0 0.0
        %556 = vmatprep.subr.mxu0 0.0
        %557 = vmatpush1.xpose.msra.mxu0 0.0
        %558 = vmatprep.subr.mxu0 0.0
        %559 = vmatpush1.xpose.msra.mxu0 0.0
        %560 = vmatprep.mubr.f32.mxu0 0.0
        %561 = vmatmul.mubr.f32.gmra.mrb[0].mxu0 %v492
        %v562 = vpop.f32.mrb[0].mxu0
        %v563 = vadd.f32 0.0, %v562
        %v564 = vpop.f32.mrb[0].mxu0
        %565 = vdwg.mxu0
        %v566 = vsel %vm325, %v563, -inf
        %567 = vmax.xlane.f32.xlu0 %v566
        %v568 = vpop.xlane.xlu0 %567
        %v569 = vsub.f32 %v563, %v568
        %v570 = vmul.f32 %v569, 1.442695
        %v571 = vpow.pop %v570
        %v572 = vsel %vm325, %v571, 0.0
        %573 = vadd.xlane.f32.xlu0 %v572
        %v574 = vpop.xlane.xlu0 %573
        %v575 = vrcp.pop %v574
        %v576 = vmul.f32 %v571, %v575
        %577 = vrot.lane.b32.xlu0 %v319, 56
        %v578 = vpop.permute.xlu0 %577
        %v581 = vsel %vm325, %v576, 0
        %583 = vmatprep.subr.mxu0 0.0
        %584 = vmatpush1.msra.mxu0 %v578
        %585 = vmatprep.subr.mxu0 0.0
        %586 = vmatpush1.msra.mxu0 0.0
        %587 = vmatprep.subr.mxu0 0.0
        %588 = vmatpush1.msra.mxu0 0.0
        %589 = vmatprep.subr.mxu0 0.0
        %590 = vmatpush1.msra.mxu0 0.0
        %591 = vmatprep.subr.mxu0 0.0
        %592 = vmatpush1.msra.mxu0 0.0
        %593 = vmatprep.subr.mxu0 0.0
        %594 = vmatpush1.msra.mxu0 0.0
        %595 = vmatprep.subr.mxu0 0.0
        %596 = vmatpush1.msra.mxu0 0.0
        %597 = vmatprep.subr.mxu0 0.0
        %598 = vmatpush1.msra.mxu0 0.0
        %599 = vmatprep.subr.mxu0 0.0
        %600 = vmatpush1.msra.mxu0 0.0
        %601 = vmatprep.subr.mxu0 0.0
        %602 = vmatpush1.msra.mxu0 0.0
        %603 = vmatprep.subr.mxu0 0.0
        %604 = vmatpush1.msra.mxu0 0.0
        %605 = vmatprep.subr.mxu0 0.0
        %606 = vmatpush1.msra.mxu0 0.0
        %607 = vmatprep.subr.mxu0 0.0
        %608 = vmatpush1.msra.mxu0 0.0
        %609 = vmatprep.subr.mxu0 0.0
        %610 = vmatpush1.msra.mxu0 0.0
        %611 = vmatprep.subr.mxu0 0.0
        %612 = vmatpush1.msra.mxu0 0.0
        %613 = vmatprep.subr.mxu0 0.0
        %614 = vmatpush1.msra.mxu0 0.0
        %615 = vmatprep.subr.mxu0 0.0
        %616 = vmatpush1.msra.mxu0 0.0
        %617 = vmatprep.subr.mxu0 0.0
        %618 = vmatpush1.msra.mxu0 0.0
        %619 = vmatprep.subr.mxu0 0.0
        %620 = vmatpush1.msra.mxu0 0.0
        %621 = vmatprep.subr.mxu0 0.0
        %622 = vmatpush1.msra.mxu0 0.0
        %623 = vmatprep.subr.mxu0 0.0
        %624 = vmatpush1.msra.mxu0 0.0
        %625 = vmatprep.subr.mxu0 0.0
        %626 = vmatpush1.msra.mxu0 0.0
        %627 = vmatprep.subr.mxu0 0.0
        %628 = vmatpush1.msra.mxu0 0.0
        %629 = vmatprep.subr.mxu0 0.0
        %630 = vmatpush1.msra.mxu0 0.0
        %631 = vmatprep.subr.mxu0 0.0
        %632 = vmatpush1.msra.mxu0 0.0
        %633 = vmatprep.subr.mxu0 0.0
        %634 = vmatpush1.msra.mxu0 0.0
        %635 = vmatprep.subr.mxu0 0.0
        %636 = vmatpush1.msra.mxu0 0.0
        %637 = vmatprep.subr.mxu0 0.0
        %638 = vmatpush1.msra.mxu0 0.0
        %639 = vmatprep.subr.mxu0 0.0
        %640 = vmatpush1.msra.mxu0 0.0
        %641 = vmatprep.subr.mxu0 0.0
        %642 = vmatpush1.msra.mxu0 0.0
        %643 = vmatprep.subr.mxu0 0.0
        %644 = vmatpush1.msra.mxu0 0.0
        %645 = vmatprep.subr.mxu0 0.0
        %646 = vmatpush1.msra.mxu0 0.0
        %647 = vmatprep.mubr.f32.mxu0 0.0
        %648 = vmatmul.mubr.f32.gmra.mrb[0].mxu0 %v581
        %v649 = vpop.f32.mrb[0].mxu0
        %v650 = vadd.f32 0.0, %v649
        %v651 = vpop.f32.mrb[0].mxu0
        %652 = vdwg.mxu0
        %s653 = scalar_lea.vmem [#allocation7], 8
        %v654 = vld [vmem:[%s653] sm:$0xff]
        %v656 = vsel %vm325, %v650, 0
        %658 = vmatprep.subr.mxu0 0.0
        %659 = vmatpush1.msra.mxu0 %v654
        %660 = vmatprep.subr.mxu0 0.0
        %661 = vmatpush1.msra.mxu0 0.0
        %662 = vmatprep.subr.mxu0 0.0
        %663 = vmatpush1.msra.mxu0 0.0
        %664 = vmatprep.subr.mxu0 0.0
        %665 = vmatpush1.msra.mxu0 0.0
        %666 = vmatprep.subr.mxu0 0.0
        %667 = vmatpush1.msra.mxu0 0.0
        %668 = vmatprep.subr.mxu0 0.0
        %669 = vmatpush1.msra.mxu0 0.0
        %670 = vmatprep.subr.mxu0 0.0
        %671 = vmatpush1.msra.mxu0 0.0
        %672 = vmatprep.subr.mxu0 0.0
        %673 = vmatpush1.msra.mxu0 0.0
        %674 = vmatprep.subr.mxu0 0.0
        %675 = vmatpush1.msra.mxu0 0.0
        %676 = vmatprep.subr.mxu0 0.0
        %677 = vmatpush1.msra.mxu0 0.0
        %678 = vmatprep.subr.mxu0 0.0
        %679 = vmatpush1.msra.mxu0 0.0
        %680 = vmatprep.subr.mxu0 0.0
        %681 = vmatpush1.msra.mxu0 0.0
        %682 = vmatprep.subr.mxu0 0.0
        %683 = vmatpush1.msra.mxu0 0.0
        %684 = vmatprep.subr.mxu0 0.0
        %685 = vmatpush1.msra.mxu0 0.0
        %686 = vmatprep.subr.mxu0 0.0
        %687 = vmatpush1.msra.mxu0 0.0
        %688 = vmatprep.subr.mxu0 0.0
        %689 = vmatpush1.msra.mxu0 0.0
        %690 = vmatprep.subr.mxu0 0.0
        %691 = vmatpush1.msra.mxu0 0.0
        %692 = vmatprep.subr.mxu0 0.0
        %693 = vmatpush1.msra.mxu0 0.0
        %694 = vmatprep.subr.mxu0 0.0
        %695 = vmatpush1.msra.mxu0 0.0
        %696 = vmatprep.subr.mxu0 0.0
        %697 = vmatpush1.msra.mxu0 0.0
        %698 = vmatprep.subr.mxu0 0.0
        %699 = vmatpush1.msra.mxu0 0.0
        %700 = vmatprep.subr.mxu0 0.0
        %701 = vmatpush1.msra.mxu0 0.0
        %702 = vmatprep.subr.mxu0 0.0
        %703 = vmatpush1.msra.mxu0 0.0
        %704 = vmatprep.subr.mxu0 0.0
        %705 = vmatpush1.msra.mxu0 0.0
        %706 = vmatprep.subr.mxu0 0.0
        %707 = vmatpush1.msra.mxu0 0.0
        %708 = vmatprep.subr.mxu0 0.0
        %709 = vmatpush1.msra.mxu0 0.0
        %710 = vmatprep.subr.mxu0 0.0
        %711 = vmatpush1.msra.mxu0 0.0
        %712 = vmatprep.subr.mxu0 0.0
        %713 = vmatpush1.msra.mxu0 0.0
        %714 = vmatprep.subr.mxu0 0.0
        %715 = vmatpush1.msra.mxu0 0.0
        %716 = vmatprep.subr.mxu0 0.0
        %717 = vmatpush1.msra.mxu0 0.0
        %718 = vmatprep.subr.mxu0 0.0
        %719 = vmatpush1.msra.mxu0 0.0
        %720 = vmatprep.subr.mxu0 0.0
        %721 = vmatpush1.msra.mxu0 0.0
        %722 = vmatprep.mubr.f32.mxu0 0.0
        %723 = vmatmul.mubr.f32.gmra.mrb[0].mxu0 %v656
        %v724 = vpop.f32.mrb[0].mxu0
        %v725 = vadd.f32 0.0, %v724
        %v726 = vpop.f32.mrb[0].mxu0
        %727 = vdwg.mxu0
        %v729 = vsel %vm325, %v484, 0
        %731 = vmatprep.subr.mxu0 0.0
        %732 = vmatpush1.msra.mxu0 %v487
        %733 = vmatprep.subr.mxu0 0.0
        %734 = vmatpush1.msra.mxu0 0.0
        %735 = vmatprep.subr.mxu0 0.0
        %736 = vmatpush1.msra.mxu0 0.0
        %737 = vmatprep.subr.mxu0 0.0
        %738 = vmatpush1.msra.mxu0 0.0
        %739 = vmatprep.subr.mxu0 0.0
        %740 = vmatpush1.msra.mxu0 0.0
        %741 = vmatprep.subr.mxu0 0.0
        %742 = vmatpush1.msra.mxu0 0.0
        %743 = vmatprep.subr.mxu0 0.0
        %744 = vmatpush1.msra.mxu0 0.0
        %745 = vmatprep.subr.mxu0 0.0
        %746 = vmatpush1.msra.mxu0 0.0
        %747 = vmatprep.subr.mxu0 0.0
        %748 = vmatpush1.msra.mxu0 0.0
        %749 = vmatprep.subr.mxu0 0.0
        %750 = vmatpush1.msra.mxu0 0.0
        %751 = vmatprep.subr.mxu0 0.0
        %752 = vmatpush1.msra.mxu0 0.0
        %753 = vmatprep.subr.mxu0 0.0
        %754 = vmatpush1.msra.mxu0 0.0
        %755 = vmatprep.subr.mxu0 0.0
        %756 = vmatpush1.msra.mxu0 0.0
        %757 = vmatprep.subr.mxu0 0.0
        %758 = vmatpush1.msra.mxu0 0.0
        %759 = vmatprep.subr.mxu0 0.0
        %760 = vmatpush1.msra.mxu0 0.0
        %761 = vmatprep.subr.mxu0 0.0
        %762 = vmatpush1.msra.mxu0 0.0
        %763 = vmatprep.subr.mxu0 0.0
        %764 = vmatpush1.msra.mxu0 0.0
        %765 = vmatprep.subr.mxu0 0.0
        %766 = vmatpush1.msra.mxu0 0.0
        %767 = vmatprep.subr.mxu0 0.0
        %768 = vmatpush1.msra.mxu0 0.0
        %769 = vmatprep.subr.mxu0 0.0
        %770 = vmatpush1.msra.mxu0 0.0
        %771 = vmatprep.subr.mxu0 0.0
        %772 = vmatpush1.msra.mxu0 0.0
        %773 = vmatprep.subr.mxu0 0.0
        %774 = vmatpush1.msra.mxu0 0.0
        %775 = vmatprep.subr.mxu0 0.0
        %776 = vmatpush1.msra.mxu0 0.0
        %777 = vmatprep.subr.mxu0 0.0
        %778 = vmatpush1.msra.mxu0 0.0
        %779 = vmatprep.subr.mxu0 0.0
        %780 = vmatpush1.msra.mxu0 0.0
        %781 = vmatprep.subr.mxu0 0.0
        %782 = vmatpush1.msra.mxu0 0.0
        %783 = vmatprep.subr.mxu0 0.0
        %784 = vmatpush1.msra.mxu0 0.0
        %785 = vmatprep.subr.mxu0 0.0
        %786 = vmatpush1.msra.mxu0 0.0
        %787 = vmatprep.subr.mxu0 0.0
        %788 = vmatpush1.msra.mxu0 0.0
        %789 = vmatprep.subr.mxu0 0.0
        %790 = vmatpush1.msra.mxu0 0.0
        %791 = vmatprep.subr.mxu0 0.0
        %792 = vmatpush1.msra.mxu0 0.0
        %793 = vmatprep.subr.mxu0 0.0
        %794 = vmatpush1.msra.mxu0 0.0
        %795 = vmatprep.mubr.f32.mxu0 0.0
        %796 = vmatmul.mubr.f32.gmra.mrb[0].mxu0 %v729
        %v797 = vpop.f32.mrb[0].mxu0
        %v798 = vadd.f32 %v725, %v797
        %v799 = vpop.f32.mrb[0].mxu0
        %800 = vdwg.mxu0
        %801 = vrot.lane.b32.xlu0 %v319, 112
        %v802 = vpop.permute.xlu0 %801
        %803 = vrot.lane.b32.xlu0 %v319, 80
        %v804 = vpop.permute.xlu0 %803
        %v805 = vsel %vm325, %v802, 0
        %v807 = vsel %vm325, %v804, 0
        %809 = vmatprep.subr.mxu0 0.0
        %810 = vmatpush1.xpose.msra.mxu0 %v807
        %811 = vmatprep.subr.mxu0 0.0
        %812 = vmatpush1.xpose.msra.mxu0 0.0
        %813 = vmatprep.subr.mxu0 0.0
        %814 = vmatpush1.xpose.msra.mxu0 0.0
        %815 = vmatprep.subr.mxu0 0.0
        %816 = vmatpush1.xpose.msra.mxu0 0.0
        %817 = vmatprep.subr.mxu0 0.0
        %818 = vmatpush1.xpose.msra.mxu0 0.0
        %819 = vmatprep.subr.mxu0 0.0
        %820 = vmatpush1.xpose.msra.mxu0 0.0
        %821 = vmatprep.subr.mxu0 0.0
        %822 = vmatpush1.xpose.msra.mxu0 0.0
        %823 = vmatprep.subr.mxu0 0.0
        %824 = vmatpush1.xpose.msra.mxu0 0.0
        %825 = vmatprep.subr.mxu0 0.0
        %826 = vmatpush1.xpose.msra.mxu0 0.0
        %827 = vmatprep.subr.mxu0 0.0
        %828 = vmatpush1.xpose.msra.mxu0 0.0
        %829 = vmatprep.subr.mxu0 0.0
        %830 = vmatpush1.xpose.msra.mxu0 0.0
        %831 = vmatprep.subr.mxu0 0.0
        %832 = vmatpush1.xpose.msra.mxu0 0.0
        %833 = vmatprep.subr.mxu0 0.0
        %834 = vmatpush1.xpose.msra.mxu0 0.0
        %835 = vmatprep.subr.mxu0 0.0
        %836 = vmatpush1.xpose.msra.mxu0 0.0
        %837 = vmatprep.subr.mxu0 0.0
        %838 = vmatpush1.xpose.msra.mxu0 0.0
        %839 = vmatprep.subr.mxu0 0.0
        %840 = vmatpush1.xpose.msra.mxu0 0.0
        %841 = vmatprep.subr.mxu0 0.0
        %842 = vmatpush1.xpose.msra.mxu0 0.0
        %843 = vmatprep.subr.mxu0 0.0
        %844 = vmatpush1.xpose.msra.mxu0 0.0
        %845 = vmatprep.subr.mxu0 0.0
        %846 = vmatpush1.xpose.msra.mxu0 0.0
        %847 = vmatprep.subr.mxu0 0.0
        %848 = vmatpush1.xpose.msra.mxu0 0.0
        %849 = vmatprep.subr.mxu0 0.0
        %850 = vmatpush1.xpose.msra.mxu0 0.0
        %851 = vmatprep.subr.mxu0 0.0
        %852 = vmatpush1.xpose.msra.mxu0 0.0
        %853 = vmatprep.subr.mxu0 0.0
        %854 = vmatpush1.xpose.msra.mxu0 0.0
        %855 = vmatprep.subr.mxu0 0.0
        %856 = vmatpush1.xpose.msra.mxu0 0.0
        %857 = vmatprep.subr.mxu0 0.0
        %858 = vmatpush1.xpose.msra.mxu0 0.0
        %859 = vmatprep.subr.mxu0 0.0
        %860 = vmatpush1.xpose.msra.mxu0 0.0
        %861 = vmatprep.subr.mxu0 0.0
        %862 = vmatpush1.xpose.msra.mxu0 0.0
        %863 = vmatprep.subr.mxu0 0.0
        %864 = vmatpush1.xpose.msra.mxu0 0.0
        %865 = vmatprep.subr.mxu0 0.0
        %866 = vmatpush1.xpose.msra.mxu0 0.0
        %867 = vmatprep.subr.mxu0 0.0
        %868 = vmatpush1.xpose.msra.mxu0 0.0
        %869 = vmatprep.subr.mxu0 0.0
        %870 = vmatpush1.xpose.msra.mxu0 0.0
        %871 = vmatprep.subr.mxu0 0.0
        %872 = vmatpush1.xpose.msra.mxu0 0.0
        %873 = vmatprep.mubr.f32.mxu0 0.0
        %874 = vmatmul.mubr.f32.gmra.mrb[0].mxu0 %v805
        %v875 = vpop.f32.mrb[0].mxu0
        %v876 = vadd.f32 0.0, %v875
        %v877 = vpop.f32.mrb[0].mxu0
        %878 = vdwg.mxu0
        %v879 = vsel %vm325, %v876, -inf
        %880 = vmax.xlane.f32.xlu0 %v879
        %v881 = vpop.xlane.xlu0 %880
        %v882 = vsub.f32 %v876, %v881
        %v883 = vmul.f32 %v882, 1.442695
        %v884 = vpow.pop %v883
        %v885 = vsel %vm325, %v884, 0.0
        %886 = vadd.xlane.f32.xlu0 %v885
        %v887 = vpop.xlane.xlu0 %886
        %v888 = vrcp.pop %v887
        %v889 = vmul.f32 %v884, %v888
        %890 = vrot.lane.b32.xlu0 %v319, 48
        %v891 = vpop.permute.xlu0 %890
        %v894 = vsel %vm325, %v889, 0
        %896 = vmatprep.subr.mxu0 0.0
        %897 = vmatpush1.msra.mxu0 %v891
        %898 = vmatprep.subr.mxu0 0.0
        %899 = vmatpush1.msra.mxu0 0.0
        %900 = vmatprep.subr.mxu0 0.0
        %901 = vmatpush1.msra.mxu0 0.0
        %902 = vmatprep.subr.mxu0 0.0
        %903 = vmatpush1.msra.mxu0 0.0
        %904 = vmatprep.subr.mxu0 0.0
        %905 = vmatpush1.msra.mxu0 0.0
        %906 = vmatprep.subr.mxu0 0.0
        %907 = vmatpush1.msra.mxu0 0.0
        %908 = vmatprep.subr.mxu0 0.0
        %909 = vmatpush1.msra.mxu0 0.0
        %910 = vmatprep.subr.mxu0 0.0
        %911 = vmatpush1.msra.mxu0 0.0
        %912 = vmatprep.subr.mxu0 0.0
        %913 = vmatpush1.msra.mxu0 0.0
        %914 = vmatprep.subr.mxu0 0.0
        %915 = vmatpush1.msra.mxu0 0.0
        %916 = vmatprep.subr.mxu0 0.0
        %917 = vmatpush1.msra.mxu0 0.0
        %918 = vmatprep.subr.mxu0 0.0
        %919 = vmatpush1.msra.mxu0 0.0
        %920 = vmatprep.subr.mxu0 0.0
        %921 = vmatpush1.msra.mxu0 0.0
        %922 = vmatprep.subr.mxu0 0.0
        %923 = vmatpush1.msra.mxu0 0.0
        %924 = vmatprep.subr.mxu0 0.0
        %925 = vmatpush1.msra.mxu0 0.0
        %926 = vmatprep.subr.mxu0 0.0
        %927 = vmatpush1.msra.mxu0 0.0
        %928 = vmatprep.subr.mxu0 0.0
        %929 = vmatpush1.msra.mxu0 0.0
        %930 = vmatprep.subr.mxu0 0.0
        %931 = vmatpush1.msra.mxu0 0.0
        %932 = vmatprep.subr.mxu0 0.0
        %933 = vmatpush1.msra.mxu0 0.0
        %934 = vmatprep.subr.mxu0 0.0
        %935 = vmatpush1.msra.mxu0 0.0
        %936 = vmatprep.subr.mxu0 0.0
        %937 = vmatpush1.msra.mxu0 0.0
        %938 = vmatprep.subr.mxu0 0.0
        %939 = vmatpush1.msra.mxu0 0.0
        %940 = vmatprep.subr.mxu0 0.0
        %941 = vmatpush1.msra.mxu0 0.0
        %942 = vmatprep.subr.mxu0 0.0
        %943 = vmatpush1.msra.mxu0 0.0
        %944 = vmatprep.subr.mxu0 0.0
        %945 = vmatpush1.msra.mxu0 0.0
        %946 = vmatprep.subr.mxu0 0.0
        %947 = vmatpush1.msra.mxu0 0.0
        %948 = vmatprep.subr.mxu0 0.0
        %949 = vmatpush1.msra.mxu0 0.0
        %950 = vmatprep.subr.mxu0 0.0
        %951 = vmatpush1.msra.mxu0 0.0
        %952 = vmatprep.subr.mxu0 0.0
        %953 = vmatpush1.msra.mxu0 0.0
        %954 = vmatprep.subr.mxu0 0.0
        %955 = vmatpush1.msra.mxu0 0.0
        %956 = vmatprep.subr.mxu0 0.0
        %957 = vmatpush1.msra.mxu0 0.0
        %958 = vmatprep.subr.mxu0 0.0
        %959 = vmatpush1.msra.mxu0 0.0
        %960 = vmatprep.mubr.f32.mxu0 0.0
        %961 = vmatmul.mubr.f32.gmra.mrb[0].mxu0 %v894
        %v962 = vpop.f32.mrb[0].mxu0
        %v963 = vadd.f32 0.0, %v962
        %v964 = vpop.f32.mrb[0].mxu0
        %965 = vdwg.mxu0
        %s966 = scalar_lea.vmem [#allocation7], 16
        %v967 = vld [vmem:[%s966] sm:$0xff]
        %v969 = vsel %vm325, %v963, 0
        %971 = vmatprep.subr.mxu0 0.0
        %972 = vmatpush1.msra.mxu0 %v967
        %973 = vmatprep.subr.mxu0 0.0
        %974 = vmatpush1.msra.mxu0 0.0
        %975 = vmatprep.subr.mxu0 0.0
        %976 = vmatpush1.msra.mxu0 0.0
        %977 = vmatprep.subr.mxu0 0.0
        %978 = vmatpush1.msra.mxu0 0.0
        %979 = vmatprep.subr.mxu0 0.0
        %980 = vmatpush1.msra.mxu0 0.0
        %981 = vmatprep.subr.mxu0 0.0
        %982 = vmatpush1.msra.mxu0 0.0
        %983 = vmatprep.subr.mxu0 0.0
        %984 = vmatpush1.msra.mxu0 0.0
        %985 = vmatprep.subr.mxu0 0.0
        %986 = vmatpush1.msra.mxu0 0.0
        %987 = vmatprep.subr.mxu0 0.0
        %988 = vmatpush1.msra.mxu0 0.0
        %989 = vmatprep.subr.mxu0 0.0
        %990 = vmatpush1.msra.mxu0 0.0
        %991 = vmatprep.subr.mxu0 0.0
        %992 = vmatpush1.msra.mxu0 0.0
        %993 = vmatprep.subr.mxu0 0.0
        %994 = vmatpush1.msra.mxu0 0.0
        %995 = vmatprep.subr.mxu0 0.0
        %996 = vmatpush1.msra.mxu0 0.0
        %997 = vmatprep.subr.mxu0 0.0
        %998 = vmatpush1.msra.mxu0 0.0
        %999 = vmatprep.subr.mxu0 0.0
        %1000 = vmatpush1.msra.mxu0 0.0
        %1001 = vmatprep.subr.mxu0 0.0
        %1002 = vmatpush1.msra.mxu0 0.0
        %1003 = vmatprep.subr.mxu0 0.0
        %1004 = vmatpush1.msra.mxu0 0.0
        %1005 = vmatprep.subr.mxu0 0.0
        %1006 = vmatpush1.msra.mxu0 0.0
        %1007 = vmatprep.subr.mxu0 0.0
        %1008 = vmatpush1.msra.mxu0 0.0
        %1009 = vmatprep.subr.mxu0 0.0
        %1010 = vmatpush1.msra.mxu0 0.0
        %1011 = vmatprep.subr.mxu0 0.0
        %1012 = vmatpush1.msra.mxu0 0.0
        %1013 = vmatprep.subr.mxu0 0.0
        %1014 = vmatpush1.msra.mxu0 0.0
        %1015 = vmatprep.subr.mxu0 0.0
        %1016 = vmatpush1.msra.mxu0 0.0
        %1017 = vmatprep.subr.mxu0 0.0
        %1018 = vmatpush1.msra.mxu0 0.0
        %1019 = vmatprep.subr.mxu0 0.0
        %1020 = vmatpush1.msra.mxu0 0.0
        %1021 = vmatprep.subr.mxu0 0.0
        %1022 = vmatpush1.msra.mxu0 0.0
        %1023 = vmatprep.subr.mxu0 0.0
        %1024 = vmatpush1.msra.mxu0 0.0
        %1025 = vmatprep.subr.mxu0 0.0
        %1026 = vmatpush1.msra.mxu0 0.0
        %1027 = vmatprep.subr.mxu0 0.0
        %1028 = vmatpush1.msra.mxu0 0.0
        %1029 = vmatprep.subr.mxu0 0.0
        %1030 = vmatpush1.msra.mxu0 0.0
        %1031 = vmatprep.subr.mxu0 0.0
        %1032 = vmatpush1.msra.mxu0 0.0
        %1033 = vmatprep.subr.mxu0 0.0
        %1034 = vmatpush1.msra.mxu0 0.0
        %1035 = vmatprep.mubr.f32.mxu0 0.0
        %1036 = vmatmul.mubr.f32.gmra.mrb[0].mxu0 %v969
        %v1037 = vpop.f32.mrb[0].mxu0
        %v1038 = vadd.f32 0.0, %v1037
        %v1039 = vpop.f32.mrb[0].mxu0
        %1040 = vdwg.mxu0
        %v1041 = vadd.f32 %v798, %v1038
        %1042 = vrot.lane.b32.xlu0 %v319, 104
        %v1043 = vpop.permute.xlu0 %1042
        %1044 = vrot.lane.b32.xlu0 %v319, 72
        %v1045 = vpop.permute.xlu0 %1044
        %v1046 = vsel %vm325, %v1043, 0
        %v1048 = vsel %vm325, %v1045, 0
        %1050 = vmatprep.subr.mxu0 0.0
        %1051 = vmatpush1.xpose.msra.mxu0 %v1048
        %1052 = vmatprep.subr.mxu0 0.0
        %1053 = vmatpush1.xpose.msra.mxu0 0.0
        %1054 = vmatprep.subr.mxu0 0.0
        %1055 = vmatpush1.xpose.msra.mxu0 0.0
        %1056 = vmatprep.subr.mxu0 0.0
        %1057 = vmatpush1.xpose.msra.mxu0 0.0
        %1058 = vmatprep.subr.mxu0 0.0
        %1059 = vmatpush1.xpose.msra.mxu0 0.0
        %1060 = vmatprep.subr.mxu0 0.0
        %1061 = vmatpush1.xpose.msra.mxu0 0.0
        %1062 = vmatprep.subr.mxu0 0.0
        %1063 = vmatpush1.xpose.msra.mxu0 0.0
        %1064 = vmatprep.subr.mxu0 0.0
        %1065 = vmatpush1.xpose.msra.mxu0 0.0
        %1066 = vmatprep.subr.mxu0 0.0
        %1067 = vmatpush1.xpose.msra.mxu0 0.0
        %1068 = vmatprep.subr.mxu0 0.0
        %1069 = vmatpush1.xpose.msra.mxu0 0.0
        %1070 = vmatprep.subr.mxu0 0.0
        %1071 = vmatpush1.xpose.msra.mxu0 0.0
        %1072 = vmatprep.subr.mxu0 0.0
        %1073 = vmatpush1.xpose.msra.mxu0 0.0
        %1074 = vmatprep.subr.mxu0 0.0
        %1075 = vmatpush1.xpose.msra.mxu0 0.0
        %1076 = vmatprep.subr.mxu0 0.0
        %1077 = vmatpush1.xpose.msra.mxu0 0.0
        %1078 = vmatprep.subr.mxu0 0.0
        %1079 = vmatpush1.xpose.msra.mxu0 0.0
        %1080 = vmatprep.subr.mxu0 0.0
        %1081 = vmatpush1.xpose.msra.mxu0 0.0
        %1082 = vmatprep.subr.mxu0 0.0
        %1083 = vmatpush1.xpose.msra.mxu0 0.0
        %1084 = vmatprep.subr.mxu0 0.0
        %1085 = vmatpush1.xpose.msra.mxu0 0.0
        %1086 = vmatprep.subr.mxu0 0.0
        %1087 = vmatpush1.xpose.msra.mxu0 0.0
        %1088 = vmatprep.subr.mxu0 0.0
        %1089 = vmatpush1.xpose.msra.mxu0 0.0
        %1090 = vmatprep.subr.mxu0 0.0
        %1091 = vmatpush1.xpose.msra.mxu0 0.0
        %1092 = vmatprep.subr.mxu0 0.0
        %1093 = vmatpush1.xpose.msra.mxu0 0.0
        %1094 = vmatprep.subr.mxu0 0.0
        %1095 = vmatpush1.xpose.msra.mxu0 0.0
        %1096 = vmatprep.subr.mxu0 0.0
        %1097 = vmatpush1.xpose.msra.mxu0 0.0
        %1098 = vmatprep.subr.mxu0 0.0
        %1099 = vmatpush1.xpose.msra.mxu0 0.0
        %1100 = vmatprep.subr.mxu0 0.0
        %1101 = vmatpush1.xpose.msra.mxu0 0.0
        %1102 = vmatprep.subr.mxu0 0.0
        %1103 = vmatpush1.xpose.msra.mxu0 0.0
        %1104 = vmatprep.subr.mxu0 0.0
        %1105 = vmatpush1.xpose.msra.mxu0 0.0
        %1106 = vmatprep.subr.mxu0 0.0
        %1107 = vmatpush1.xpose.msra.mxu0 0.0
        %1108 = vmatprep.subr.mxu0 0.0
        %1109 = vmatpush1.xpose.msra.mxu0 0.0
        %1110 = vmatprep.subr.mxu0 0.0
        %1111 = vmatpush1.xpose.msra.mxu0 0.0
        %1112 = vmatprep.subr.mxu0 0.0
        %1113 = vmatpush1.xpose.msra.mxu0 0.0
        %1114 = vmatprep.mubr.f32.mxu0 0.0
        %1115 = vmatmul.mubr.f32.gmra.mrb[0].mxu0 %v1046
        %v1116 = vpop.f32.mrb[0].mxu0
        %v1117 = vadd.f32 0.0, %v1116
        %v1118 = vpop.f32.mrb[0].mxu0
        %1119 = vdwg.mxu0
        %v1120 = vsel %vm325, %v1117, -inf
        %1121 = vmax.xlane.f32.xlu0 %v1120
        %v1122 = vpop.xlane.xlu0 %1121
        %v1123 = vsub.f32 %v1117, %v1122
        %v1124 = vmul.f32 %v1123, 1.442695
        %v1125 = vpow.pop %v1124
        %v1126 = vsel %vm325, %v1125, 0.0
        %1127 = vadd.xlane.f32.xlu0 %v1126
        %v1128 = vpop.xlane.xlu0 %1127
        %v1129 = vrcp.pop %v1128
        %v1130 = vmul.f32 %v1125, %v1129
        %1131 = vrot.lane.b32.xlu0 %v319, 40
        %v1132 = vpop.permute.xlu0 %1131
        %v1135 = vsel %vm325, %v1130, 0
        %1137 = vmatprep.subr.mxu0 0.0
        %1138 = vmatpush1.msra.mxu0 %v1132
        %1139 = vmatprep.subr.mxu0 0.0
        %1140 = vmatpush1.msra.mxu0 0.0
        %1141 = vmatprep.subr.mxu0 0.0
        %1142 = vmatpush1.msra.mxu0 0.0
        %1143 = vmatprep.subr.mxu0 0.0
        %1144 = vmatpush1.msra.mxu0 0.0
        %1145 = vmatprep.subr.mxu0 0.0
        %1146 = vmatpush1.msra.mxu0 0.0
        %1147 = vmatprep.subr.mxu0 0.0
        %1148 = vmatpush1.msra.mxu0 0.0
        %1149 = vmatprep.subr.mxu0 0.0
        %1150 = vmatpush1.msra.mxu0 0.0
        %1151 = vmatprep.subr.mxu0 0.0
        %1152 = vmatpush1.msra.mxu0 0.0
        %1153 = vmatprep.subr.mxu0 0.0
        %1154 = vmatpush1.msra.mxu0 0.0
        %1155 = vmatprep.subr.mxu0 0.0
        %1156 = vmatpush1.msra.mxu0 0.0
        %1157 = vmatprep.subr.mxu0 0.0
        %1158 = vmatpush1.msra.mxu0 0.0
        %1159 = vmatprep.subr.mxu0 0.0
        %1160 = vmatpush1.msra.mxu0 0.0
        %1161 = vmatprep.subr.mxu0 0.0
        %1162 = vmatpush1.msra.mxu0 0.0
        %1163 = vmatprep.subr.mxu0 0.0
        %1164 = vmatpush1.msra.mxu0 0.0
        %1165 = vmatprep.subr.mxu0 0.0
        %1166 = vmatpush1.msra.mxu0 0.0
        %1167 = vmatprep.subr.mxu0 0.0
        %1168 = vmatpush1.msra.mxu0 0.0
        %1169 = vmatprep.subr.mxu0 0.0
        %1170 = vmatpush1.msra.mxu0 0.0
        %1171 = vmatprep.subr.mxu0 0.0
        %1172 = vmatpush1.msra.mxu0 0.0
        %1173 = vmatprep.subr.mxu0 0.0
        %1174 = vmatpush1.msra.mxu0 0.0
        %1175 = vmatprep.subr.mxu0 0.0
        %1176 = vmatpush1.msra.mxu0 0.0
        %1177 = vmatprep.subr.mxu0 0.0
        %1178 = vmatpush1.msra.mxu0 0.0
        %1179 = vmatprep.subr.mxu0 0.0
        %1180 = vmatpush1.msra.mxu0 0.0
        %1181 = vmatprep.subr.mxu0 0.0
        %1182 = vmatpush1.msra.mxu0 0.0
        %1183 = vmatprep.subr.mxu0 0.0
        %1184 = vmatpush1.msra.mxu0 0.0
        %1185 = vmatprep.subr.mxu0 0.0
        %1186 = vmatpush1.msra.mxu0 0.0
        %1187 = vmatprep.subr.mxu0 0.0
        %1188 = vmatpush1.msra.mxu0 0.0
        %1189 = vmatprep.subr.mxu0 0.0
        %1190 = vmatpush1.msra.mxu0 0.0
        %1191 = vmatprep.subr.mxu0 0.0
        %1192 = vmatpush1.msra.mxu0 0.0
        %1193 = vmatprep.subr.mxu0 0.0
        %1194 = vmatpush1.msra.mxu0 0.0
        %1195 = vmatprep.subr.mxu0 0.0
        %1196 = vmatpush1.msra.mxu0 0.0
        %1197 = vmatprep.subr.mxu0 0.0
        %1198 = vmatpush1.msra.mxu0 0.0
        %1199 = vmatprep.subr.mxu0 0.0
        %1200 = vmatpush1.msra.mxu0 0.0
        %1201 = vmatprep.mubr.f32.mxu0 0.0
        %1202 = vmatmul.mubr.f32.gmra.mrb[0].mxu0 %v1135
        %v1203 = vpop.f32.mrb[0].mxu0
        %v1204 = vadd.f32 0.0, %v1203
        %v1205 = vpop.f32.mrb[0].mxu0
        %1206 = vdwg.mxu0
        %s1207 = scalar_lea.vmem [#allocation7], 24
        %v1208 = vld [vmem:[%s1207] sm:$0xff]
        %v1210 = vsel %vm325, %v1204, 0
        %1212 = vmatprep.subr.mxu0 0.0
        %1213 = vmatpush1.msra.mxu0 %v1208
        %1214 = vmatprep.subr.mxu0 0.0
        %1215 = vmatpush1.msra.mxu0 0.0
        %1216 = vmatprep.subr.mxu0 0.0
        %1217 = vmatpush1.msra.mxu0 0.0
        %1218 = vmatprep.subr.mxu0 0.0
        %1219 = vmatpush1.msra.mxu0 0.0
        %1220 = vmatprep.subr.mxu0 0.0
        %1221 = vmatpush1.msra.mxu0 0.0
        %1222 = vmatprep.subr.mxu0 0.0
        %1223 = vmatpush1.msra.mxu0 0.0
        %1224 = vmatprep.subr.mxu0 0.0
        %1225 = vmatpush1.msra.mxu0 0.0
        %1226 = vmatprep.subr.mxu0 0.0
        %1227 = vmatpush1.msra.mxu0 0.0
        %1228 = vmatprep.subr.mxu0 0.0
        %1229 = vmatpush1.msra.mxu0 0.0
        %1230 = vmatprep.subr.mxu0 0.0
        %1231 = vmatpush1.msra.mxu0 0.0
        %1232 = vmatprep.subr.mxu0 0.0
        %1233 = vmatpush1.msra.mxu0 0.0
        %1234 = vmatprep.subr.mxu0 0.0
        %1235 = vmatpush1.msra.mxu0 0.0
        %1236 = vmatprep.subr.mxu0 0.0
        %1237 = vmatpush1.msra.mxu0 0.0
        %1238 = vmatprep.subr.mxu0 0.0
        %1239 = vmatpush1.msra.mxu0 0.0
        %1240 = vmatprep.subr.mxu0 0.0
        %1241 = vmatpush1.msra.mxu0 0.0
        %1242 = vmatprep.subr.mxu0 0.0
        %1243 = vmatpush1.msra.mxu0 0.0
        %1244 = vmatprep.subr.mxu0 0.0
        %1245 = vmatpush1.msra.mxu0 0.0
        %1246 = vmatprep.subr.mxu0 0.0
        %1247 = vmatpush1.msra.mxu0 0.0
        %1248 = vmatprep.subr.mxu0 0.0
        %1249 = vmatpush1.msra.mxu0 0.0
        %1250 = vmatprep.subr.mxu0 0.0
        %1251 = vmatpush1.msra.mxu0 0.0
        %1252 = vmatprep.subr.mxu0 0.0
        %1253 = vmatpush1.msra.mxu0 0.0
        %1254 = vmatprep.subr.mxu0 0.0
        %1255 = vmatpush1.msra.mxu0 0.0
        %1256 = vmatprep.subr.mxu0 0.0
        %1257 = vmatpush1.msra.mxu0 0.0
        %1258 = vmatprep.subr.mxu0 0.0
        %1259 = vmatpush1.msra.mxu0 0.0
        %1260 = vmatprep.subr.mxu0 0.0
        %1261 = vmatpush1.msra.mxu0 0.0
        %1262 = vmatprep.subr.mxu0 0.0
        %1263 = vmatpush1.msra.mxu0 0.0
        %1264 = vmatprep.subr.mxu0 0.0
        %1265 = vmatpush1.msra.mxu0 0.0
        %1266 = vmatprep.subr.mxu0 0.0
        %1267 = vmatpush1.msra.mxu0 0.0
        %1268 = vmatprep.subr.mxu0 0.0
        %1269 = vmatpush1.msra.mxu0 0.0
        %1270 = vmatprep.subr.mxu0 0.0
        %1271 = vmatpush1.msra.mxu0 0.0
        %1272 = vmatprep.subr.mxu0 0.0
        %1273 = vmatpush1.msra.mxu0 0.0
        %1274 = vmatprep.subr.mxu0 0.0
        %1275 = vmatpush1.msra.mxu0 0.0
        %1276 = vmatprep.mubr.f32.mxu0 0.0
        %1277 = vmatmul.mubr.f32.gmra.mrb[0].mxu0 %v1210
        %v1278 = vpop.f32.mrb[0].mxu0
        %v1279 = vadd.f32 0.0, %v1278
        %v1280 = vpop.f32.mrb[0].mxu0
        %1281 = vdwg.mxu0
        %v1282 = vadd.f32 %v1041, %v1279
        %v1284 = vlaneseq
        %v1285 = vshrl.u32 %v1284, 7
        %v1286 = vsub.s32 0, %v1285
        %v1287 = vrot.slane %v247, %v1286
        %v1289 = vadd.f32 %v1282, %v1287
        %1290 = vst.msk [vmem:[%s241] sm:$0xff] %vm248, %v1289
        %s1291 = sand.u32 %s119, 1
        %s1292 = scalar_lea.sflag [#allocation4], %s1291
        %s1293 = sand.u32 %s119, 1
        %s1294 = smul.addr %s1293, 8
        %s1295 = scalar_lea.vmem [#allocation8], %s1294
        // Predicated region
        $region49: #{tpu_custom_call.1} parent=35 // pred_check
          %p1296 = pneg %p129
        $region50: #{tpu_custom_call.1} parent=35 // pred_check_branch
          %1298 = sbr.rel (%p1296) target = $region52
        $region51: #{tpu_custom_call.1} parent=35 // pred_region
          %s1300 = ssub.s32 128, 128
          %1301 = vsyncadd %s1292, %s1300
          %s1302 = smul.addr %s22, 128
          %s1303 = scalar_lea.hbm %s4, %s1302
          %s1305 = sshll.u32 %s1295, 4
          %s1306 = int_to_ptr.vmem [resolvable:$true] %s1305
          %1308 = dma.vmem_to_hbm [thread:$0]  %s1306, 128, %s1303, %s1292
        $region52: #{tpu_custom_call.1} parent=35 // pred_fallthru
          _
      $region36: #{tpu_custom_call.1} parent=5 // pred_fallthru
        _
      %p1309 = scmp.le.s32.totalorder 2, %s17
      // Predicated region
      $region53: #{tpu_custom_call.1} parent=5 // pred_check
        %p1310 = pneg %p1309
      $region54: #{tpu_custom_call.1} parent=5 // pred_check_branch
        %1312 = sbr.rel (%p1310) target = $region56
      $region55: #{tpu_custom_call.1} parent=5 // pred_region
        %s1313 = ssub.s32 %s17, 2
        // Predicated region
        $region57: #{tpu_custom_call.1} parent=55 // pred_check
          %p1314 = pneg %p135
        $region58: #{tpu_custom_call.1} parent=55 // pred_check_branch
          %1316 = sbr.rel (%p1314) target = $region60
        $region59: #{tpu_custom_call.1} parent=55 // pred_region
          %s1317 = sand.u32 %s120, 1
          %s1318 = scalar_lea.sflag [#allocation4], %s1317
          %s1319 = sand.u32 %s120, 1
          %s1320 = smul.addr %s1319, 8
          %s1321 = scalar_lea.vmem [#allocation8], %s1320
          %1322 = dma.done %s1318, 128
        $region60: #{tpu_custom_call.1} parent=55 // pred_fallthru
          _
      $region56: #{tpu_custom_call.1} parent=5 // pred_fallthru
        _
    $region6: #{tpu_custom_call.1} parent=1 // loop_footer
      %s21 = sadd.s32 1, %s17
    $region7: #{tpu_custom_call.1} parent=1 // loop_footer_branch
      %16 = sbr.rel target = $region3
    $region8: #{tpu_custom_call.1} parent=1 // loop_exit
      _
    %1323 = vsyncpa [#allocation3], 1
    %s1324 = scalar_lea.sflag [#allocation3], 1
    %1325 = vsyncpa %s1324, 1
    %1326 = vsyncpa [#allocation6], 1
    %1327 = vsyncpa [#allocation4], 1
    %s1328 = scalar_lea.sflag [#allocation4], 1
    %1329 = vsyncpa %s1328, 1

</llo_original>
